<compile_context>
chip_gen: v5e
topology: v5e:2x2
jax: 0.10.0
libtpu: 0.0.40
codegen_flags: <defaults>
</compile_context>

<pallas_src>
import functools

import jax
import jax.numpy as jnp
from jax import lax
from jax.experimental import pallas as pl
from jax.experimental.pallas import tpu as pltpu


# ----------------------------------------------------------------------------
# Fused kernel: all LSTM layers + final FC in one invocation.
# ----------------------------------------------------------------------------
def _fused_lstm_fc_kernel(*refs, num_layers, hidden_size, batch, seq_len):
    L, H, B, T = num_layers, hidden_size, batch, seq_len

    # ---- unpack refs (inputs..., outputs..., scratch...) -------------------
    idx = 0
    x_ref = refs[idx]; idx += 1          # (T*B, I)  time-major flattened input (f32)
    h0_ref = refs[idx]; idx += 1         # (L, B, H) f32
    c0_ref = refs[idx]; idx += 1         # (L, B, H) f32
    wih_refs, whh_refs, b_refs = [], [], []
    for _ in range(L):
        wih_refs.append(refs[idx]); idx += 1   # (in_dim, 4H) bf16
        whh_refs.append(refs[idx]); idx += 1   # (H, 4H)      bf16
        b_refs.append(refs[idx]); idx += 1     # (1, 4H)      f32
    fcw_ref = refs[idx]; idx += 1        # (H, O) bf16
    fcb_ref = refs[idx]; idx += 1        # (1, O) f32
    out_ref = refs[idx]; idx += 1        # (B, O)
    hn_ref = refs[idx]; idx += 1         # (L, B, H)
    cn_ref = refs[idx]; idx += 1         # (L, B, H)
    xw_scr = refs[idx]; idx += 1         # (T*B, 4H) f32  VMEM scratch (x @ W_ih + bias)
    y_scr = refs[idx]; idx += 1          # (T*B, H)  f32  VMEM scratch (layer output)

    def lstm_cell(gates, c_prev):
        # gates: (B, 4H) f32, PyTorch gate order (i, f, g, o).
        # H is a multiple of 128 => each gate slice is full-lane aligned.
        i_g = jax.nn.sigmoid(gates[:, 0 * H:1 * H])
        f_g = jax.nn.sigmoid(gates[:, 1 * H:2 * H])
        g_g = jnp.tanh(gates[:, 2 * H:3 * H])
        o_g = jax.nn.sigmoid(gates[:, 3 * H:4 * H])
        c_new = f_g * c_prev + i_g * g_g
        h_new = o_g * jnp.tanh(c_new)
        return h_new, c_new

    h = None
    for l in range(L):
        w_ih_ref = wih_refs[l]
        w_hh_ref = whh_refs[l]
        bias = b_refs[l][...].astype(jnp.float32)                # (1, 4H)

        # Sequence-wide input projection in ONE MXU matmul (bf16 operands,
        # f32 accumulation); bias broadcast hoisted out of the recurrence.
        # Result is staged in VMEM scratch, not held live in vregs.
        if l == 0:
            inp = x_ref[...].astype(jnp.bfloat16)                # (T*B, I)
        else:
            # Previous layer's outputs, already time-major in VMEM.
            # TODO(synk): inter-layer dropout (p=0.2) is train-only; identity here.
            inp = y_scr[...].astype(jnp.bfloat16)                # (T*B, H)
        xw_scr[...] = jnp.dot(inp, w_ih_ref[...],
                              preferred_element_type=jnp.float32) + bias

        h = h0_ref[l].astype(jnp.float32)                        # (B, H)
        c = c0_ref[l].astype(jnp.float32)                        # (B, H)
        write_y = l < L - 1

        # Recurrence: fori_loop carrying only (h, c); only h @ W_hh per step.
        # TODO(synk): hold W_hh in MXU weight-staging registers across the time
        # loop (pltpu.matmul_push_rhs / matmul_acc_lhs / matmul_pop) to avoid
        # reloading the RHS every step on the serial critical path.
        # TODO(synk): a layer-wavefront schedule (layer l at step t while layer
        # l+1 runs step t-1) would hide the EUP/VPU cell phase under other
        # layers' MXU pushes.
        def step(t, carry, w_hh_ref=w_hh_ref, write_y=write_y):
            h, c = carry
            row = pl.multiple_of(t * B, B)                       # sublane-aligned slab
            gates = xw_scr[pl.ds(row, B), :] + jnp.dot(
                h.astype(jnp.bfloat16), w_hh_ref[...],
                preferred_element_type=jnp.float32)
            h_new, c_new = lstm_cell(gates, c)
            if write_y:   # last layer never feeds a next layer; skip the store
                y_scr[pl.ds(row, B), :] = h_new
            return (h_new, c_new)

        h, c = lax.fori_loop(0, T, step, (h, c))

        hn_ref[l] = h.astype(hn_ref.dtype)
        cn_ref[l] = c.astype(cn_ref.dtype)

    # Final FC on the top layer's last hidden state (== out[:, -1, :] in PyTorch).
    out = jnp.dot(h.astype(jnp.bfloat16), fcw_ref[...],
                  preferred_element_type=jnp.float32) \
        + fcb_ref[...].astype(jnp.float32)
    out_ref[...] = out.astype(out_ref.dtype)


# ----------------------------------------------------------------------------
# Wrapper: one pallas_call for the entire model forward.
# ----------------------------------------------------------------------------
def lstm_model_forward(x, params, hidden=None):
    """Mirrors LSTMModel.forward (eval path).

    x: (B, T, input_size)
    returns (out, (hn, cn)) with out: (B, output_size),
            hn, cn: (num_layers, B, hidden_size)
    """
    B, T, I = x.shape
    L = len(params["lstm"])
    H = params["lstm"][0]["w_hh"].shape[0]
    O = params["fc_w_t"].shape[1]
    dtype = x.dtype

    if hidden is None:
        h0 = jnp.zeros((L, B, H), dtype)
        c0 = jnp.zeros((L, B, H), dtype)
    else:
        h0, c0 = hidden
        h0 = h0.astype(dtype)
        c0 = c0.astype(dtype)

    # Time-major flatten so timestep t is rows [t*B, (t+1)*B) inside the kernel.
    # TODO(synk): fold this transpose into the kernel (BlockSpec over (B,Tc,I) +
    # in-VMEM relayout) to avoid the extra HBM pass over x for large (B,T,I);
    # kept host-side here for portability (x is the smallest operand).
    x_2d = jnp.transpose(x, (1, 0, 2)).reshape(T * B, I)

    inputs = [x_2d, h0, c0]
    in_specs = [
        pl.BlockSpec((T * B, I), lambda i: (0, 0)),
        pl.BlockSpec((L, B, H), lambda i: (0, 0, 0)),
        pl.BlockSpec((L, B, H), lambda i: (0, 0, 0)),
    ]
    # Weights go in as bf16 (MXU-native; halves HBM->VMEM DMA and VMEM residency).
    # Master params stay f32; the cast happens once at the call boundary.
    # TODO(synk): for large H/L where all layers' weights do not fit VMEM,
    # stream layer l+1's weights with a manual make_async_copy (memory_space=
    # pl.ANY + double buffer + DMA semaphore) while layer l's recurrence runs.
    for l in range(L):
        p = params["lstm"][l]
        in_dim = p["w_ih"].shape[0]
        inputs += [p["w_ih"].astype(jnp.bfloat16),
                   p["w_hh"].astype(jnp.bfloat16),
                   p["bias"]]
        in_specs += [
            pl.BlockSpec((in_dim, 4 * H), lambda i: (0, 0)),
            pl.BlockSpec((H, 4 * H), lambda i: (0, 0)),
            pl.BlockSpec((1, 4 * H), lambda i: (0, 0)),
        ]
    inputs += [params["fc_w_t"].astype(jnp.bfloat16), params["fc_b"]]
    in_specs += [
        pl.BlockSpec((H, O), lambda i: (0, 0)),
        pl.BlockSpec((1, O), lambda i: (0, 0)),
    ]

    kernel = functools.partial(_fused_lstm_fc_kernel, num_layers=L,
                               hidden_size=H, batch=B, seq_len=T)

    # TODO(synk): for long sequences make time-chunks an 'arbitrary' grid axis
    # (x BlockSpec (Tc*B, I), h/c carried in scratch) so VMEM is O(Tc*B*4H).
    # TODO(synk): on v7x, split the batch across both TensorCores with a leading
    # 'parallel' grid axis (or pl.core_map) — the recurrence is batch-independent.
    out, hn, cn = pl.pallas_call(
        kernel,
        out_shape=(
            jax.ShapeDtypeStruct((B, O), dtype),
            jax.ShapeDtypeStruct((L, B, H), dtype),
            jax.ShapeDtypeStruct((L, B, H), dtype),
        ),
        grid_spec=pltpu.PrefetchScalarGridSpec(
            num_scalar_prefetch=0,
            grid=(1,),
            in_specs=in_specs,
            out_specs=[
                pl.BlockSpec((B, O), lambda i: (0, 0)),
                pl.BlockSpec((L, B, H), lambda i: (0, 0, 0)),
                pl.BlockSpec((L, B, H), lambda i: (0, 0, 0)),
            ],
            scratch_shapes=[
                pltpu.VMEM((T * B, 4 * H), jnp.float32),   # x @ W_ih + bias slab
                pltpu.VMEM((T * B, H), jnp.float32),       # layer output -> next input
            ],
        ),
        compiler_params=pltpu.CompilerParams(
            dimension_semantics=("arbitrary",),
            # 48 MiB leaves headroom on v7x (64 MiB physical); raise toward
            # ~96 MiB on v5e/v6e (128 MiB physical) only if a bigger config needs it.
            vmem_limit_bytes=48 * 1024 * 1024,
        ),
    )(*inputs)
    return out, (hn, cn)


# ----------------------------------------------------------------------------
# Parameter init (PyTorch-compatible shapes, stored pre-transposed, f32 master).
# ----------------------------------------------------------------------------
def init_params(key, input_size, hidden_size, num_layers, output_size):
    bound = 1.0 / jnp.sqrt(jnp.float32(hidden_size))
    params = {"lstm": []}
    for l in range(num_layers):
        in_sz = input_size if l == 0 else hidden_size
        key, k1, k2, k3, k4 = jax.random.split(key, 5)
        w_ih = jax.random.uniform(k1, (in_sz, 4 * hidden_size),
                                  jnp.float32, -bound, bound)
        w_hh = jax.random.uniform(k2, (hidden_size, 4 * hidden_size),
                                  jnp.float32, -bound, bound)
        b_ih = jax.random.uniform(k3, (4 * hidden_size,), jnp.float32, -bound, bound)
        b_hh = jax.random.uniform(k4, (4 * hidden_size,), jnp.float32, -bound, bound)
        params["lstm"].append(
            {"w_ih": w_ih, "w_hh": w_hh, "bias": (b_ih + b_hh)[None, :]})
    key, k5, k6 = jax.random.split(key, 3)
    fb = 1.0 / jnp.sqrt(jnp.float32(hidden_size))
    params["fc_w_t"] = jax.random.uniform(k5, (hidden_size, output_size),
                                          jnp.float32, -fb, fb)
    params["fc_b"] = jax.random.uniform(k6, (1, output_size), jnp.float32, -fb, fb)
    return params


# ----------------------------------------------------------------------------
# Pure-JAX reference (mirrors the kernel's mixed precision: bf16 matmul operands,
# f32 accumulation and f32 cell math) for sanity checking.
# ----------------------------------------------------------------------------
def ref_forward(x, params, hidden=None):
    B, T, _ = x.shape
    H = params["lstm"][0]["w_hh"].shape[0]
    L = len(params["lstm"])

    def mm(a, b):
        return jnp.dot(a.astype(jnp.bfloat16), b.astype(jnp.bfloat16),
                       preferred_element_type=jnp.float32)

    if hidden is None:
        h_init = [jnp.zeros((B, H), jnp.float32) for _ in range(L)]
        c_init = [jnp.zeros((B, H), jnp.float32) for _ in range(L)]
    else:
        h0, c0 = hidden
        h_init = [h0[l].astype(jnp.float32) for l in range(L)]
        c_init = [c0[l].astype(jnp.float32) for l in range(L)]

    layer_in = x.astype(jnp.float32)
    hn_list, cn_list = [], []
    for l in range(L):
        p = params["lstm"][l]
        h, c = h_init[l], c_init[l]
        ys = []
        for t in range(T):
            g = mm(layer_in[:, t, :], p["w_ih"]) + mm(h, p["w_hh"]) + p["bias"]
            i = jax.nn.sigmoid(g[:, :H])
            f = jax.nn.sigmoid(g[:, H:2 * H])
            gg = jnp.tanh(g[:, 2 * H:3 * H])
            o = jax.nn.sigmoid(g[:, 3 * H:])
            c = f * c + i * gg
            h = o * jnp.tanh(c)
            ys.append(h)
        layer_in = jnp.stack(ys, 1)
        hn_list.append(h)
        cn_list.append(c)
    out = mm(layer_in[:, -1, :], params["fc_w_t"]) + params["fc_b"]
    return out, (jnp.stack(hn_list, 0), jnp.stack(cn_list, 0))


if __name__ == "__main__":
    # Small but lane/sublane-aligned demo sizes (H multiple of 128, B multiple of 8).
    INPUT_SIZE, HIDDEN_SIZE, NUM_LAYERS, OUTPUT_SIZE = 4, 128, 2, 1
    BATCH, SEQ = 8, 8

    key = jax.random.PRNGKey(0)
    key, kx, kh, kc = jax.random.split(key, 4)
    x = jax.random.normal(kx, (BATCH, SEQ, INPUT_SIZE), jnp.float32)
    params = init_params(key, INPUT_SIZE, HIDDEN_SIZE, NUM_LAYERS, OUTPUT_SIZE)

    fwd = jax.jit(lstm_model_forward)

    # --- Path 1: hidden=None (zero initial state) ---------------------------
    out, (hn, cn) = fwd(x, params)
    jax.block_until_ready((out, hn, cn))
    assert out.shape == (BATCH, OUTPUT_SIZE)
    assert hn.shape == (NUM_LAYERS, BATCH, HIDDEN_SIZE)
    assert cn.shape == (NUM_LAYERS, BATCH, HIDDEN_SIZE)

    ref_out, (ref_hn, ref_cn) = ref_forward(x, params)
    assert jnp.allclose(out, ref_out, atol=1e-2, rtol=1e-2)
    assert jnp.allclose(hn, ref_hn, atol=1e-2, rtol=1e-2)
    assert jnp.allclose(cn, ref_cn, atol=1e-2, rtol=1e-2)

    # --- Path 2: user-provided (h0, c0) --------------------------------------
    h0 = 0.5 * jax.random.normal(kh, (NUM_LAYERS, BATCH, HIDDEN_SIZE), jnp.float32)
    c0 = 0.5 * jax.random.normal(kc, (NUM_LAYERS, BATCH, HIDDEN_SIZE), jnp.float32)
    out2, (hn2, cn2) = fwd(x, params, (h0, c0))
    jax.block_until_ready((out2, hn2, cn2))
    ref_out2, (ref_hn2, ref_cn2) = ref_forward(x, params, (h0, c0))
    assert jnp.allclose(out2, ref_out2, atol=1e-2, rtol=1e-2)
    assert jnp.allclose(hn2, ref_hn2, atol=1e-2, rtol=1e-2)
    assert jnp.allclose(cn2, ref_cn2, atol=1e-2, rtol=1e-2)

    print("KERNEL_OK")
</pallas_src>

<mosaic_0001>
module attributes {stable_mosaic.version = 11 : i64} {
  func.func @_fused_lstm_fc_kernel(%arg0: i32, %arg1: memref<64x4xf32, #tpu.memory_space<vmem>>, %arg2: memref<2x8x128xf32, #tpu.memory_space<vmem>>, %arg3: memref<2x8x128xf32, #tpu.memory_space<vmem>>, %arg4: memref<4x512xbf16, #tpu.memory_space<vmem>>, %arg5: memref<128x512xbf16, #tpu.memory_space<vmem>>, %arg6: memref<1x512xf32, #tpu.memory_space<vmem>>, %arg7: memref<128x512xbf16, #tpu.memory_space<vmem>>, %arg8: memref<128x512xbf16, #tpu.memory_space<vmem>>, %arg9: memref<1x512xf32, #tpu.memory_space<vmem>>, %arg10: memref<128x1xbf16, #tpu.memory_space<vmem>>, %arg11: memref<1x1xf32, #tpu.memory_space<vmem>>, %arg12: memref<8x1xf32, #tpu.memory_space<vmem>>, %arg13: memref<2x8x128xf32, #tpu.memory_space<vmem>>, %arg14: memref<2x8x128xf32, #tpu.memory_space<vmem>>, %arg15: memref<64x512xf32, #tpu.memory_space<vmem>>, %arg16: memref<64x128xf32, #tpu.memory_space<vmem>>) attributes {dimension_semantics = [#tpu.dimension_semantics<arbitrary>], iteration_bounds = array<i64: 1>, scalar_prefetch = 0 : i64, scratch_operands = 2 : i64, tpu.core_type = #tpu.core_type<tc>, window_params = [{pipeline_mode = #tpu.pipeline_mode<synchronous>, transform_indices = @transform_0, window_bounds = array<i64: 64, 4>}, {pipeline_mode = #tpu.pipeline_mode<synchronous>, transform_indices = @transform_1, window_bounds = array<i64: 2, 8, 128>}, {pipeline_mode = #tpu.pipeline_mode<synchronous>, transform_indices = @transform_2, window_bounds = array<i64: 2, 8, 128>}, {pipeline_mode = #tpu.pipeline_mode<synchronous>, transform_indices = @transform_3, window_bounds = array<i64: 4, 512>}, {pipeline_mode = #tpu.pipeline_mode<synchronous>, transform_indices = @transform_4, window_bounds = array<i64: 128, 512>}, {pipeline_mode = #tpu.pipeline_mode<synchronous>, transform_indices = @transform_5, window_bounds = array<i64: 1, 512>}, {pipeline_mode = #tpu.pipeline_mode<synchronous>, transform_indices = @transform_6, window_bounds = array<i64: 128, 512>}, {pipeline_mode = #tpu.pipeline_mode<synchronous>, transform_indices = @transform_7, window_bounds = array<i64: 128, 512>}, {pipeline_mode = #tpu.pipeline_mode<synchronous>, transform_indices = @transform_8, window_bounds = array<i64: 1, 512>}, {pipeline_mode = #tpu.pipeline_mode<synchronous>, transform_indices = @transform_9, window_bounds = array<i64: 128, 1>}, {pipeline_mode = #tpu.pipeline_mode<synchronous>, transform_indices = @transform_10, window_bounds = array<i64: 1, 1>}, {pipeline_mode = #tpu.pipeline_mode<synchronous>, transform_indices = @transform_11, window_bounds = array<i64: 8, 1>}, {pipeline_mode = #tpu.pipeline_mode<synchronous>, transform_indices = @transform_12, window_bounds = array<i64: 2, 8, 128>}, {pipeline_mode = #tpu.pipeline_mode<synchronous>, transform_indices = @transform_13, window_bounds = array<i64: 2, 8, 128>}]} {
    %c0 = arith.constant 0 : index
    %c0_0 = arith.constant 0 : index
    %0 = vector.load %arg6[%c0, %c0_0] : memref<1x512xf32, #tpu.memory_space<vmem>>, vector<1x512xf32>
    %c0_1 = arith.constant 0 : index
    %c0_2 = arith.constant 0 : index
    %1 = vector.load %arg1[%c0_1, %c0_2] : memref<64x4xf32, #tpu.memory_space<vmem>>, vector<64x4xf32>
    %2 = arith.truncf %1 : vector<64x4xf32> to vector<64x4xbf16>
    %c0_3 = arith.constant 0 : index
    %c0_4 = arith.constant 0 : index
    %3 = vector.load %arg4[%c0_3, %c0_4] : memref<4x512xbf16, #tpu.memory_space<vmem>>, vector<4x512xbf16>
    %cst = arith.constant dense<0.000000e+00> : vector<64x512xf32>
    %4 = tpu.matmul %2, %3, %cst {dimension_numbers = #tpu.dot_dimension_numbers<[1], [0], [0], [1], [0, 0, 1, 1], [], []>} : vector<64x4xbf16>, vector<4x512xbf16>, vector<64x512xf32> -> vector<64x512xf32>
    %5 = vector.broadcast %0 : vector<1x512xf32> to vector<64x512xf32>
    %6 = arith.addf %4, %5 : vector<64x512xf32>
    %c0_5 = arith.constant 0 : index
    %c0_6 = arith.constant 0 : index
    %7 = vector.load %arg15[%c0_5, %c0_6] : memref<64x512xf32, #tpu.memory_space<vmem>>, vector<64x512xf32>
    tpu.vector_store %arg15[%c0_5, %c0_6], %6 {strides = array<i32>} : memref<64x512xf32, #tpu.memory_space<vmem>>, vector<64x512xf32>,
    %c0_7 = arith.constant 0 : index
    %c0_8 = arith.constant 0 : index
    %c0_9 = arith.constant 0 : index
    %8 = vector.load %arg2[%c0_7, %c0_8, %c0_9] : memref<2x8x128xf32, #tpu.memory_space<vmem>>, vector<1x8x128xf32>
    %9 = vector.shape_cast %8 : vector<1x8x128xf32> to vector<8x128xf32>
    %c0_10 = arith.constant 0 : index
    %c0_11 = arith.constant 0 : index
    %c0_12 = arith.constant 0 : index
    %10 = vector.load %arg3[%c0_10, %c0_11, %c0_12] : memref<2x8x128xf32, #tpu.memory_space<vmem>>, vector<1x8x128xf32>
    %11 = vector.shape_cast %10 : vector<1x8x128xf32> to vector<8x128xf32>
    %c0_i32 = arith.constant 0 : i32
    %c8_i32 = arith.constant 8 : i32
    %12 = arith.addi %c0_i32, %c8_i32 : i32
    %c1_i32 = arith.constant 1 : i32
    %13:2 = scf.for %arg17 = %c0_i32 to %12 step %c1_i32 iter_args(%arg18 = %9, %arg19 = %11) -> (vector<8x128xf32>, vector<8x128xf32>)  : i32 {
      %c8_i32_51 = arith.constant 8 : i32
      %47 = arith.muli %arg17, %c8_i32_51 : i32
      %48 = tpu.assume_multiple %47, 8 : i32
      %49 = arith.index_cast %48 : i32 to index
      %c0_52 = arith.constant 0 : index
      %50 = vector.load %arg15[%49, %c0_52] : memref<64x512xf32, #tpu.memory_space<vmem>>, vector<8x512xf32>
      %51 = arith.truncf %arg18 : vector<8x128xf32> to vector<8x128xbf16>
      %c0_53 = arith.constant 0 : index
      %c0_54 = arith.constant 0 : index
      %52 = vector.load %arg5[%c0_53, %c0_54] : memref<128x512xbf16, #tpu.memory_space<vmem>>, vector<128x512xbf16>
      %cst_55 = arith.constant dense<0.000000e+00> : vector<8x512xf32>
      %53 = tpu.matmul %51, %52, %cst_55 {dimension_numbers = #tpu.dot_dimension_numbers<[1], [0], [0], [1], [0, 0, 1, 1], [], []>} : vector<8x128xbf16>, vector<128x512xbf16>, vector<8x512xf32> -> vector<8x512xf32>
      %54 = arith.addf %50, %53 : vector<8x512xf32>
      %55 = vector.extract_strided_slice %54 {offsets = [0, 0], sizes = [8, 128], strides = [1, 1]} : vector<8x512xf32> to vector<8x128xf32>
      %56 = arith.negf %55 : vector<8x128xf32>
      %57 = math.exp %56 : vector<8x128xf32>
      %cst_56 = arith.constant 1.000000e+00 : f32
      %58 = vector.broadcast %cst_56 : f32 to vector<8x128xf32>
      %59 = arith.addf %58, %57 : vector<8x128xf32>
      %60 = arith.divf %58, %59 : vector<8x128xf32>
      %61 = vector.extract_strided_slice %54 {offsets = [0, 128], sizes = [8, 128], strides = [1, 1]} : vector<8x512xf32> to vector<8x128xf32>
      %62 = arith.negf %61 : vector<8x128xf32>
      %63 = math.exp %62 : vector<8x128xf32>
      %cst_57 = arith.constant 1.000000e+00 : f32
      %64 = vector.broadcast %cst_57 : f32 to vector<8x128xf32>
      %65 = arith.addf %64, %63 : vector<8x128xf32>
      %66 = arith.divf %64, %65 : vector<8x128xf32>
      %67 = vector.extract_strided_slice %54 {offsets = [0, 256], sizes = [8, 128], strides = [1, 1]} : vector<8x512xf32> to vector<8x128xf32>
      %68 = math.tanh %67 : vector<8x128xf32>
      %69 = vector.extract_strided_slice %54 {offsets = [0, 384], sizes = [8, 128], strides = [1, 1]} : vector<8x512xf32> to vector<8x128xf32>
      %70 = arith.negf %69 : vector<8x128xf32>
      %71 = math.exp %70 : vector<8x128xf32>
      %cst_58 = arith.constant 1.000000e+00 : f32
      %72 = vector.broadcast %cst_58 : f32 to vector<8x128xf32>
      %73 = arith.addf %72, %71 : vector<8x128xf32>
      %74 = arith.divf %72, %73 : vector<8x128xf32>
      %75 = arith.mulf %66, %arg19 : vector<8x128xf32>
      %76 = arith.mulf %60, %68 : vector<8x128xf32>
      %77 = arith.addf %75, %76 : vector<8x128xf32>
      %78 = math.tanh %77 : vector<8x128xf32>
      %79 = arith.mulf %74, %78 : vector<8x128xf32>
      %80 = arith.index_cast %48 : i32 to index
      %c0_59 = arith.constant 0 : index
      %81 = vector.load %arg16[%80, %c0_59] : memref<64x128xf32, #tpu.memory_space<vmem>>, vector<8x128xf32>
      tpu.vector_store %arg16[%80, %c0_59], %79 {strides = array<i32>} : memref<64x128xf32, #tpu.memory_space<vmem>>, vector<8x128xf32>,
      scf.yield %79, %77 : vector<8x128xf32>, vector<8x128xf32>
    }
    %c8_i32_13 = arith.constant 8 : i32
    %c0_14 = arith.constant 0 : index
    %c0_15 = arith.constant 0 : index
    %c0_16 = arith.constant 0 : index
    %14 = vector.load %arg13[%c0_14, %c0_15, %c0_16] : memref<2x8x128xf32, #tpu.memory_space<vmem>>, vector<1x8x128xf32>
    %15 = vector.shape_cast %14 : vector<1x8x128xf32> to vector<8x128xf32>
    %16 = vector.shape_cast %13#0 : vector<8x128xf32> to vector<1x8x128xf32>
    tpu.vector_store %arg13[%c0_14, %c0_15, %c0_16], %16 {strides = array<i32>} : memref<2x8x128xf32, #tpu.memory_space<vmem>>, vector<1x8x128xf32>,
    %c0_17 = arith.constant 0 : index
    %c0_18 = arith.constant 0 : index
    %c0_19 = arith.constant 0 : index
    %17 = vector.load %arg14[%c0_17, %c0_18, %c0_19] : memref<2x8x128xf32, #tpu.memory_space<vmem>>, vector<1x8x128xf32>
    %18 = vector.shape_cast %17 : vector<1x8x128xf32> to vector<8x128xf32>
    %19 = vector.shape_cast %13#1 : vector<8x128xf32> to vector<1x8x128xf32>
    tpu.vector_store %arg14[%c0_17, %c0_18, %c0_19], %19 {strides = array<i32>} : memref<2x8x128xf32, #tpu.memory_space<vmem>>, vector<1x8x128xf32>,
    %c0_20 = arith.constant 0 : index
    %c0_21 = arith.constant 0 : index
    %20 = vector.load %arg9[%c0_20, %c0_21] : memref<1x512xf32, #tpu.memory_space<vmem>>, vector<1x512xf32>
    %c0_22 = arith.constant 0 : index
    %c0_23 = arith.constant 0 : index
    %21 = vector.load %arg16[%c0_22, %c0_23] : memref<64x128xf32, #tpu.memory_space<vmem>>, vector<64x128xf32>
    %22 = arith.truncf %21 : vector<64x128xf32> to vector<64x128xbf16>
    %c0_24 = arith.constant 0 : index
    %c0_25 = arith.constant 0 : index
    %23 = vector.load %arg7[%c0_24, %c0_25] : memref<128x512xbf16, #tpu.memory_space<vmem>>, vector<128x512xbf16>
    %cst_26 = arith.constant dense<0.000000e+00> : vector<64x512xf32>
    %24 = tpu.matmul %22, %23, %cst_26 {dimension_numbers = #tpu.dot_dimension_numbers<[1], [0], [0], [1], [0, 0, 1, 1], [], []>} : vector<64x128xbf16>, vector<128x512xbf16>, vector<64x512xf32> -> vector<64x512xf32>
    %25 = vector.broadcast %20 : vector<1x512xf32> to vector<64x512xf32>
    %26 = arith.addf %24, %25 : vector<64x512xf32>
    %c0_27 = arith.constant 0 : index
    %c0_28 = arith.constant 0 : index
    %27 = vector.load %arg15[%c0_27, %c0_28] : memref<64x512xf32, #tpu.memory_space<vmem>>, vector<64x512xf32>
    tpu.vector_store %arg15[%c0_27, %c0_28], %26 {strides = array<i32>} : memref<64x512xf32, #tpu.memory_space<vmem>>, vector<64x512xf32>,
    %c1 = arith.constant 1 : index
    %c0_29 = arith.constant 0 : index
    %c0_30 = arith.constant 0 : index
    %28 = vector.load %arg2[%c1, %c0_29, %c0_30] : memref<2x8x128xf32, #tpu.memory_space<vmem>>, vector<1x8x128xf32>
    %29 = vector.shape_cast %28 : vector<1x8x128xf32> to vector<8x128xf32>
    %c1_31 = arith.constant 1 : index
    %c0_32 = arith.constant 0 : index
    %c0_33 = arith.constant 0 : index
    %30 = vector.load %arg3[%c1_31, %c0_32, %c0_33] : memref<2x8x128xf32, #tpu.memory_space<vmem>>, vector<1x8x128xf32>
    %31 = vector.shape_cast %30 : vector<1x8x128xf32> to vector<8x128xf32>
    %c0_i32_34 = arith.constant 0 : i32
    %c8_i32_35 = arith.constant 8 : i32
    %32 = arith.addi %c0_i32_34, %c8_i32_35 : i32
    %c1_i32_36 = arith.constant 1 : i32
    %33:2 = scf.for %arg17 = %c0_i32_34 to %32 step %c1_i32_36 iter_args(%arg18 = %29, %arg19 = %31) -> (vector<8x128xf32>, vector<8x128xf32>)  : i32 {
      %c8_i32_51 = arith.constant 8 : i32
      %47 = arith.muli %arg17, %c8_i32_51 : i32
      %48 = tpu.assume_multiple %47, 8 : i32
      %49 = arith.index_cast %48 : i32 to index
      %c0_52 = arith.constant 0 : index
      %50 = vector.load %arg15[%49, %c0_52] : memref<64x512xf32, #tpu.memory_space<vmem>>, vector<8x512xf32>
      %51 = arith.truncf %arg18 : vector<8x128xf32> to vector<8x128xbf16>
      %c0_53 = arith.constant 0 : index
      %c0_54 = arith.constant 0 : index
      %52 = vector.load %arg8[%c0_53, %c0_54] : memref<128x512xbf16, #tpu.memory_space<vmem>>, vector<128x512xbf16>
      %cst_55 = arith.constant dense<0.000000e+00> : vector<8x512xf32>
      %53 = tpu.matmul %51, %52, %cst_55 {dimension_numbers = #tpu.dot_dimension_numbers<[1], [0], [0], [1], [0, 0, 1, 1], [], []>} : vector<8x128xbf16>, vector<128x512xbf16>, vector<8x512xf32> -> vector<8x512xf32>
      %54 = arith.addf %50, %53 : vector<8x512xf32>
      %55 = vector.extract_strided_slice %54 {offsets = [0, 0], sizes = [8, 128], strides = [1, 1]} : vector<8x512xf32> to vector<8x128xf32>
      %56 = arith.negf %55 : vector<8x128xf32>
      %57 = math.exp %56 : vector<8x128xf32>
      %cst_56 = arith.constant 1.000000e+00 : f32
      %58 = vector.broadcast %cst_56 : f32 to vector<8x128xf32>
      %59 = arith.addf %58, %57 : vector<8x128xf32>
      %60 = arith.divf %58, %59 : vector<8x128xf32>
      %61 = vector.extract_strided_slice %54 {offsets = [0, 128], sizes = [8, 128], strides = [1, 1]} : vector<8x512xf32> to vector<8x128xf32>
      %62 = arith.negf %61 : vector<8x128xf32>
      %63 = math.exp %62 : vector<8x128xf32>
      %cst_57 = arith.constant 1.000000e+00 : f32
      %64 = vector.broadcast %cst_57 : f32 to vector<8x128xf32>
      %65 = arith.addf %64, %63 : vector<8x128xf32>
      %66 = arith.divf %64, %65 : vector<8x128xf32>
      %67 = vector.extract_strided_slice %54 {offsets = [0, 256], sizes = [8, 128], strides = [1, 1]} : vector<8x512xf32> to vector<8x128xf32>
      %68 = math.tanh %67 : vector<8x128xf32>
      %69 = vector.extract_strided_slice %54 {offsets = [0, 384], sizes = [8, 128], strides = [1, 1]} : vector<8x512xf32> to vector<8x128xf32>
      %70 = arith.negf %69 : vector<8x128xf32>
      %71 = math.exp %70 : vector<8x128xf32>
      %cst_58 = arith.constant 1.000000e+00 : f32
      %72 = vector.broadcast %cst_58 : f32 to vector<8x128xf32>
      %73 = arith.addf %72, %71 : vector<8x128xf32>
      %74 = arith.divf %72, %73 : vector<8x128xf32>
      %75 = arith.mulf %66, %arg19 : vector<8x128xf32>
      %76 = arith.mulf %60, %68 : vector<8x128xf32>
      %77 = arith.addf %75, %76 : vector<8x128xf32>
      %78 = math.tanh %77 : vector<8x128xf32>
      %79 = arith.mulf %74, %78 : vector<8x128xf32>
      scf.yield %79, %77 : vector<8x128xf32>, vector<8x128xf32>
    }
    %c8_i32_37 = arith.constant 8 : i32
    %c1_38 = arith.constant 1 : index
    %c0_39 = arith.constant 0 : index
    %c0_40 = arith.constant 0 : index
    %34 = vector.load %arg13[%c1_38, %c0_39, %c0_40] : memref<2x8x128xf32, #tpu.memory_space<vmem>>, vector<1x8x128xf32>
    %35 = vector.shape_cast %34 : vector<1x8x128xf32> to vector<8x128xf32>
    %36 = vector.shape_cast %33#0 : vector<8x128xf32> to vector<1x8x128xf32>
    tpu.vector_store %arg13[%c1_38, %c0_39, %c0_40], %36 {strides = array<i32>} : memref<2x8x128xf32, #tpu.memory_space<vmem>>, vector<1x8x128xf32>,
    %c1_41 = arith.constant 1 : index
    %c0_42 = arith.constant 0 : index
    %c0_43 = arith.constant 0 : index
    %37 = vector.load %arg14[%c1_41, %c0_42, %c0_43] : memref<2x8x128xf32, #tpu.memory_space<vmem>>, vector<1x8x128xf32>
    %38 = vector.shape_cast %37 : vector<1x8x128xf32> to vector<8x128xf32>
    %39 = vector.shape_cast %33#1 : vector<8x128xf32> to vector<1x8x128xf32>
    tpu.vector_store %arg14[%c1_41, %c0_42, %c0_43], %39 {strides = array<i32>} : memref<2x8x128xf32, #tpu.memory_space<vmem>>, vector<1x8x128xf32>,
    %40 = arith.truncf %33#0 : vector<8x128xf32> to vector<8x128xbf16>
    %c0_44 = arith.constant 0 : index
    %c0_45 = arith.constant 0 : index
    %41 = vector.load %arg10[%c0_44, %c0_45] : memref<128x1xbf16, #tpu.memory_space<vmem>>, vector<128x1xbf16>
    %cst_46 = arith.constant dense<0.000000e+00> : vector<8x1xf32>
    %42 = tpu.matmul %40, %41, %cst_46 {dimension_numbers = #tpu.dot_dimension_numbers<[1], [0], [0], [1], [0, 0, 1, 1], [], []>} : vector<8x128xbf16>, vector<128x1xbf16>, vector<8x1xf32> -> vector<8x1xf32>
    %c0_47 = arith.constant 0 : index
    %c0_48 = arith.constant 0 : index
    %43 = vector.load %arg11[%c0_47, %c0_48] : memref<1x1xf32, #tpu.memory_space<vmem>>, vector<1x1xf32>
    %44 = vector.broadcast %43 : vector<1x1xf32> to vector<8x1xf32>
    %45 = arith.addf %42, %44 : vector<8x1xf32>
    %c0_49 = arith.constant 0 : index
    %c0_50 = arith.constant 0 : index
    %46 = vector.load %arg12[%c0_49, %c0_50] : memref<8x1xf32, #tpu.memory_space<vmem>>, vector<8x1xf32>
    tpu.vector_store %arg12[%c0_49, %c0_50], %45 {strides = array<i32>} : memref<8x1xf32, #tpu.memory_space<vmem>>, vector<8x1xf32>,
    return
  }
  func.func @transform_0(%arg0: i32) -> (i32, i32) {
    %c0_i32 = arith.constant 0 : i32
    %c0_i32_0 = arith.constant 0 : i32
    %c0_i32_1 = arith.constant 0 : i32
    return %c0_i32, %c0_i32_0 : i32, i32
  }
  func.func @transform_1(%arg0: i32) -> (i32, i32, i32) {
    %c0_i32 = arith.constant 0 : i32
    %c0_i32_0 = arith.constant 0 : i32
    %c0_i32_1 = arith.constant 0 : i32
    %c0_i32_2 = arith.constant 0 : i32
    return %c0_i32, %c0_i32_0, %c0_i32_1 : i32, i32, i32
  }
  func.func @transform_2(%arg0: i32) -> (i32, i32, i32) {
    %c0_i32 = arith.constant 0 : i32
    %c0_i32_0 = arith.constant 0 : i32
    %c0_i32_1 = arith.constant 0 : i32
    %c0_i32_2 = arith.constant 0 : i32
    return %c0_i32, %c0_i32_0, %c0_i32_1 : i32, i32, i32
  }
  func.func @transform_3(%arg0: i32) -> (i32, i32) {
    %c0_i32 = arith.constant 0 : i32
    %c0_i32_0 = arith.constant 0 : i32
    %c0_i32_1 = arith.constant 0 : i32
    return %c0_i32, %c0_i32_0 : i32, i32
  }
  func.func @transform_4(%arg0: i32) -> (i32, i32) {
    %c0_i32 = arith.constant 0 : i32
    %c0_i32_0 = arith.constant 0 : i32
    %c0_i32_1 = arith.constant 0 : i32
    return %c0_i32, %c0_i32_0 : i32, i32
  }
  func.func @transform_5(%arg0: i32) -> (i32, i32) {
    %c0_i32 = arith.constant 0 : i32
    %c0_i32_0 = arith.constant 0 : i32
    %c0_i32_1 = arith.constant 0 : i32
    return %c0_i32, %c0_i32_0 : i32, i32
  }
  func.func @transform_6(%arg0: i32) -> (i32, i32) {
    %c0_i32 = arith.constant 0 : i32
    %c0_i32_0 = arith.constant 0 : i32
    %c0_i32_1 = arith.constant 0 : i32
    return %c0_i32, %c0_i32_0 : i32, i32
  }
  func.func @transform_7(%arg0: i32) -> (i32, i32) {
    %c0_i32 = arith.constant 0 : i32
    %c0_i32_0 = arith.constant 0 : i32
    %c0_i32_1 = arith.constant 0 : i32
    return %c0_i32, %c0_i32_0 : i32, i32
  }
  func.func @transform_8(%arg0: i32) -> (i32, i32) {
    %c0_i32 = arith.constant 0 : i32
    %c0_i32_0 = arith.constant 0 : i32
    %c0_i32_1 = arith.constant 0 : i32
    return %c0_i32, %c0_i32_0 : i32, i32
  }
  func.func @transform_9(%arg0: i32) -> (i32, i32) {
    %c0_i32 = arith.constant 0 : i32
    %c0_i32_0 = arith.constant 0 : i32
    %c0_i32_1 = arith.constant 0 : i32
    return %c0_i32, %c0_i32_0 : i32, i32
  }
  func.func @transform_10(%arg0: i32) -> (i32, i32) {
    %c0_i32 = arith.constant 0 : i32
    %c0_i32_0 = arith.constant 0 : i32
    %c0_i32_1 = arith.constant 0 : i32
    return %c0_i32, %c0_i32_0 : i32, i32
  }
  func.func @transform_11(%arg0: i32) -> (i32, i32) {
    %c0_i32 = arith.constant 0 : i32
    %c0_i32_0 = arith.constant 0 : i32
    %c0_i32_1 = arith.constant 0 : i32
    return %c0_i32, %c0_i32_0 : i32, i32
  }
  func.func @transform_12(%arg0: i32) -> (i32, i32, i32) {
    %c0_i32 = arith.constant 0 : i32
    %c0_i32_0 = arith.constant 0 : i32
    %c0_i32_1 = arith.constant 0 : i32
    %c0_i32_2 = arith.constant 0 : i32
    return %c0_i32, %c0_i32_0, %c0_i32_1 : i32, i32, i32
  }
  func.func @transform_13(%arg0: i32) -> (i32, i32, i32) {
    %c0_i32 = arith.constant 0 : i32
    %c0_i32_0 = arith.constant 0 : i32
    %c0_i32_1 = arith.constant 0 : i32
    %c0_i32_2 = arith.constant 0 : i32
    return %c0_i32, %c0_i32_0, %c0_i32_1 : i32, i32, i32
  }
}

</mosaic_0001>

<llo_original>
// kernel: lstm_model_forward.1
$region0: #{lstm_model_forward.1}
  #allocation0 [shape = 'u32[]', space=smem, size = 0x4, offset = 0x4, fixed_abs, tag = 'smem constant byte address 0x4 - core index']
  #allocation1 [shape = 'u32[72,128]{1,0:T(1,128)}', space=vmem, size = 0x9000, scoped, tag = 'internal scratch']
  #allocation2 [shape = 'f32[64,512]{1,0:T(8,128)}', space=vmem, size = 0x20000, scoped, tag = 'scratch operand']
  #allocation3 [shape = 'f32[64,128]{1,0:T(8,128)}', space=vmem, size = 0x8000, scoped, tag = 'scratch operand']
  #allocation4 [shape = 'f32[1,1]{1,0:T(1,128)S(1)}', space=vmem, size = 0x200, scoped, tag = 'scoped memory for lstm_model_forward.1']
  %s0 = inlined_call_operand.vmem [shape: f32[64,4], index: 0, kind: input, shape index: {}]
  %s1 = inlined_call_operand.vmem [shape: f32[2,8,128], index: 1, kind: input, shape index: {}, may-alias: {1,2}]
  %s2 = inlined_call_operand.vmem [shape: f32[2,8,128], index: 2, kind: input, shape index: {}, may-alias: {1,2}]
  %s3 = inlined_call_operand.vmem [shape: bf16[4,512], index: 3, kind: input, shape index: {}]
  %s4 = inlined_call_operand.vmem [shape: bf16[128,512], index: 4, kind: input, shape index: {}]
  %s5 = inlined_call_operand.vmem [shape: f32[1,512], index: 5, kind: input, shape index: {}]
  %s6 = inlined_call_operand.vmem [shape: bf16[128,512], index: 6, kind: input, shape index: {}]
  %s7 = inlined_call_operand.vmem [shape: bf16[128,512], index: 7, kind: input, shape index: {}]
  %s8 = inlined_call_operand.vmem [shape: f32[1,512], index: 8, kind: input, shape index: {}]
  %s9 = inlined_call_operand.vmem [shape: bf16[128,1], index: 9, kind: input, shape index: {}]
  %s10 = inlined_call_operand.<no memory space> [shape: f32[1,1], index: 10, kind: input, shape index: {}]
  %s11 = inlined_call_operand.vmem [shape: f32[8,1], index: 11, kind: output, shape index: {0}]
  %s12 = inlined_call_operand.hbm [shape: f32[2,8,128], index: 12, kind: output, shape index: {1}]
  %s13 = inlined_call_operand.hbm [shape: f32[2,8,128], index: 13, kind: output, shape index: {2}]
  %14 = xla_tuple %s11, %s12, %s13
  %s15 = sld [smem:[#allocation0]]
  $region84: #{lstm_model_forward.1} parent=0
    _
  %s17 = ssub.s32 1, %s15
  %s18 = scalar_select 0, %s17, %s15
  %v19 = vstv %s10
  %20 = vst [vmem:[#allocation4] sm:$0x1] %v19
  $region1: #{lstm_model_forward.1} parent=0
    #allocation5 [shape = 'u8[8192]{0}', space=vmem, size = 0x2000, scoped, tag = 'output window, operand 1, single buffered']
    #allocation6 [shape = 's32[1]{0}', space=sflag, size = 0x4, scoped, tag = 'scoped memory for lstm_model_forward.1']
    #allocation7 [shape = 'u8[8192]{0}', space=vmem, size = 0x2000, scoped, tag = 'output window, operand 2, single buffered']
    #allocation8 [shape = 's32[1]{0}', space=sflag, size = 0x4, scoped, tag = 'scoped memory for lstm_model_forward.1']
    %21 = vsyncpa [#allocation6], 0
    %22 = vsyncpa [#allocation8], 0
    // Predicated region
    $region2: #{lstm_model_forward.1} parent=1 // pred_check
      _
    $region3: #{lstm_model_forward.1} parent=1 // pred_check_branch
      %24 = sbr.rel (0) target = $region5
    $region4: #{lstm_model_forward.1} parent=1 // pred_region
      _
    $region5: #{lstm_model_forward.1} parent=1 // pred_fallthru
      _
    // Predicated region
    $region6: #{lstm_model_forward.1} parent=1 // pred_check
      _
    $region7: #{lstm_model_forward.1} parent=1 // pred_check_branch
      %26 = sbr.rel (0) target = $region9
    $region8: #{lstm_model_forward.1} parent=1 // pred_region
      _
    $region9: #{lstm_model_forward.1} parent=1 // pred_fallthru
      _
    // Predicated region
    $region10: #{lstm_model_forward.1} parent=1 // pred_check
      _
    $region11: #{lstm_model_forward.1} parent=1 // pred_check_branch
      %28 = sbr.rel (0) target = $region13
    $region12: #{lstm_model_forward.1} parent=1 // pred_region
      _
    $region13: #{lstm_model_forward.1} parent=1 // pred_fallthru
      _
    // Predicated region
    $region14: #{lstm_model_forward.1} parent=1 // pred_check
      _
    $region15: #{lstm_model_forward.1} parent=1 // pred_check_branch
      %30 = sbr.rel (0) target = $region17
    $region16: #{lstm_model_forward.1} parent=1 // pred_region
      _
    $region17: #{lstm_model_forward.1} parent=1 // pred_fallthru
      _
    // Predicated region
    $region18: #{lstm_model_forward.1} parent=1 // pred_check
      _
    $region19: #{lstm_model_forward.1} parent=1 // pred_check_branch
      %32 = sbr.rel (0) target = $region21
    $region20: #{lstm_model_forward.1} parent=1 // pred_region
      _
    $region21: #{lstm_model_forward.1} parent=1 // pred_fallthru
      _
    // Predicated region
    $region22: #{lstm_model_forward.1} parent=1 // pred_check
      _
    $region23: #{lstm_model_forward.1} parent=1 // pred_check_branch
      %34 = sbr.rel (0) target = $region25
    $region24: #{lstm_model_forward.1} parent=1 // pred_region
      _
    $region25: #{lstm_model_forward.1} parent=1 // pred_fallthru
      _
    // Predicated region
    $region26: #{lstm_model_forward.1} parent=1 // pred_check
      _
    $region27: #{lstm_model_forward.1} parent=1 // pred_check_branch
      %36 = sbr.rel (0) target = $region29
    $region28: #{lstm_model_forward.1} parent=1 // pred_region
      _
    $region29: #{lstm_model_forward.1} parent=1 // pred_fallthru
      _
    // Predicated region
    $region30: #{lstm_model_forward.1} parent=1 // pred_check
      _
    $region31: #{lstm_model_forward.1} parent=1 // pred_check_branch
      %38 = sbr.rel (0) target = $region33
    $region32: #{lstm_model_forward.1} parent=1 // pred_region
      _
    $region33: #{lstm_model_forward.1} parent=1 // pred_fallthru
      _
    // Predicated region
    $region34: #{lstm_model_forward.1} parent=1 // pred_check
      _
    $region35: #{lstm_model_forward.1} parent=1 // pred_check_branch
      %40 = sbr.rel (0) target = $region37
    $region36: #{lstm_model_forward.1} parent=1 // pred_region
      _
    $region37: #{lstm_model_forward.1} parent=1 // pred_fallthru
      _
    // Predicated region
    $region38: #{lstm_model_forward.1} parent=1 // pred_check
      _
    $region39: #{lstm_model_forward.1} parent=1 // pred_check_branch
      %42 = sbr.rel (0) target = $region41
    $region40: #{lstm_model_forward.1} parent=1 // pred_region
      _
    $region41: #{lstm_model_forward.1} parent=1 // pred_fallthru
      _
    // Predicated region
    $region42: #{lstm_model_forward.1} parent=1 // pred_check
      _
    $region43: #{lstm_model_forward.1} parent=1 // pred_check_branch
      %44 = sbr.rel (0) target = $region45
    $region44: #{lstm_model_forward.1} parent=1 // pred_region
      _
    $region45: #{lstm_model_forward.1} parent=1 // pred_fallthru
      _
    %v46 = vld [vmem:[%s5] sm:$0xf]
    %v47 = vld [vmem:[%s0] sm:$0xff]
    %v48 = vld [vmem:[%s0 + $0x8] sm:$0xff]
    %v49 = vld [vmem:[%s0 + $0x10] sm:$0xff]
    %v50 = vld [vmem:[%s0 + $0x18] sm:$0xff]
    %v51 = vld [vmem:[%s0 + $0x20] sm:$0xff]
    %v52 = vld [vmem:[%s0 + $0x28] sm:$0xff]
    %v53 = vld [vmem:[%s0 + $0x30] sm:$0xff]
    %v54 = vld [vmem:[%s0 + $0x38] sm:$0xff]
    %v55 = vpack.c.bf16 %v48, %v47
    %v56 = vpack.c.bf16 %v50, %v49
    %v57 = vpack.c.bf16 %v52, %v51
    %v58 = vpack.c.bf16 %v54, %v53
    %v59 = vld [vmem:[%s3] sm:$0xff]
    %v61 = vperm.slane %v46, 0
    %v62 = vperm.slane %v46, 1
    %v63 = vperm.slane %v46, 2
    %v64 = vperm.slane %v46, 3
    %70 = vst [vmem:[#allocation1] ss:$4 sm:$0xff] %v59
    %v71 = vld.sshfl [vmem:[#allocation1] sm:$0xff pattern:$0x73625140]
    %v72 = vld.sshfl [vmem:[#allocation1 + $0x8] sm:$0xff pattern:$0x73625140]
    %v73 = vld.sshfl [vmem:[#allocation1 + $0x10] sm:$0xff pattern:$0x73625140]
    %v74 = vld.sshfl [vmem:[#allocation1 + $0x18] sm:$0xff pattern:$0x73625140]
    %vm75 = vcmask 31744
    %v77 = vsel %vm75, %v55, 0
    %v80 = vsel %vm75, %v56, 0
    %v83 = vsel %vm75, %v57, 0
    %v86 = vsel %vm75, %v58, 0
    %vm88 = vcmask 1041408
    %v89 = vsel %vm88, %v71, 0
    %v91 = vsel %vm88, %v72, 0
    %v93 = vsel %vm88, %v73, 0
    %v95 = vsel %vm88, %v74, 0
    %97 = vmatpush.bf16.msra.mxu0 0
    %98 = vmatpush.bf16.msra.mxu0 0
    %99 = vmatpush.bf16.msra.mxu0 0
    %100 = vmatpush.bf16.msra.mxu0 0
    %101 = vmatpush.bf16.msra.mxu0 0
    %102 = vmatpush.bf16.msra.mxu0 0
    %103 = vmatpush.bf16.msra.mxu0 0
    %104 = vmatpush.bf16.msra.mxu0 %v89
    %105 = vmatmul.bf16.gmra.mxu0 %v77
    %v106 = vpop.f32.mrf.mxu0
    %v107 = vadd.f32 %v61, %v106
    %v108 = vpop.f32.mrf.mxu0
    %v109 = vadd.f32 %v61, %v108
    %110 = vmatmul.bf16.gmra.mxu0 %v80
    %v111 = vpop.f32.mrf.mxu0
    %v112 = vadd.f32 %v61, %v111
    %v113 = vpop.f32.mrf.mxu0
    %v114 = vadd.f32 %v61, %v113
    %115 = vmatmul.bf16.gmra.mxu0 %v83
    %v116 = vpop.f32.mrf.mxu0
    %v117 = vadd.f32 %v61, %v116
    %v118 = vpop.f32.mrf.mxu0
    %v119 = vadd.f32 %v61, %v118
    %120 = vmatmul.bf16.gmra.mxu0 %v86
    %v121 = vpop.f32.mrf.mxu0
    %v122 = vadd.f32 %v61, %v121
    %v123 = vpop.f32.mrf.mxu0
    %v124 = vadd.f32 %v61, %v123
    %125 = vdwg.mxu0
    %126 = vmatpush.bf16.msra.mxu0 0
    %127 = vmatpush.bf16.msra.mxu0 0
    %128 = vmatpush.bf16.msra.mxu0 0
    %129 = vmatpush.bf16.msra.mxu0 0
    %130 = vmatpush.bf16.msra.mxu0 0
    %131 = vmatpush.bf16.msra.mxu0 0
    %132 = vmatpush.bf16.msra.mxu0 0
    %133 = vmatpush.bf16.msra.mxu0 %v91
    %134 = vmatmul.bf16.gmra.mxu0 %v77
    %v135 = vpop.f32.mrf.mxu0
    %v136 = vadd.f32 %v62, %v135
    %v137 = vpop.f32.mrf.mxu0
    %v138 = vadd.f32 %v62, %v137
    %139 = vmatmul.bf16.gmra.mxu0 %v80
    %v140 = vpop.f32.mrf.mxu0
    %v141 = vadd.f32 %v62, %v140
    %v142 = vpop.f32.mrf.mxu0
    %v143 = vadd.f32 %v62, %v142
    %144 = vmatmul.bf16.gmra.mxu0 %v83
    %v145 = vpop.f32.mrf.mxu0
    %v146 = vadd.f32 %v62, %v145
    %v147 = vpop.f32.mrf.mxu0
    %v148 = vadd.f32 %v62, %v147
    %149 = vmatmul.bf16.gmra.mxu0 %v86
    %v150 = vpop.f32.mrf.mxu0
    %v151 = vadd.f32 %v62, %v150
    %v152 = vpop.f32.mrf.mxu0
    %v153 = vadd.f32 %v62, %v152
    %154 = vdwg.mxu0
    %155 = vmatpush.bf16.msra.mxu0 0
    %156 = vmatpush.bf16.msra.mxu0 0
    %157 = vmatpush.bf16.msra.mxu0 0
    %158 = vmatpush.bf16.msra.mxu0 0
    %159 = vmatpush.bf16.msra.mxu0 0
    %160 = vmatpush.bf16.msra.mxu0 0
    %161 = vmatpush.bf16.msra.mxu0 0
    %162 = vmatpush.bf16.msra.mxu0 %v93
    %163 = vmatmul.bf16.gmra.mxu0 %v77
    %v164 = vpop.f32.mrf.mxu0
    %v165 = vadd.f32 %v63, %v164
    %v166 = vpop.f32.mrf.mxu0
    %v167 = vadd.f32 %v63, %v166
    %168 = vmatmul.bf16.gmra.mxu0 %v80
    %v169 = vpop.f32.mrf.mxu0
    %v170 = vadd.f32 %v63, %v169
    %v171 = vpop.f32.mrf.mxu0
    %v172 = vadd.f32 %v63, %v171
    %173 = vmatmul.bf16.gmra.mxu0 %v83
    %v174 = vpop.f32.mrf.mxu0
    %v175 = vadd.f32 %v63, %v174
    %v176 = vpop.f32.mrf.mxu0
    %v177 = vadd.f32 %v63, %v176
    %178 = vmatmul.bf16.gmra.mxu0 %v86
    %v179 = vpop.f32.mrf.mxu0
    %v180 = vadd.f32 %v63, %v179
    %v181 = vpop.f32.mrf.mxu0
    %v182 = vadd.f32 %v63, %v181
    %183 = vdwg.mxu0
    %184 = vmatpush.bf16.msra.mxu0 0
    %185 = vmatpush.bf16.msra.mxu0 0
    %186 = vmatpush.bf16.msra.mxu0 0
    %187 = vmatpush.bf16.msra.mxu0 0
    %188 = vmatpush.bf16.msra.mxu0 0
    %189 = vmatpush.bf16.msra.mxu0 0
    %190 = vmatpush.bf16.msra.mxu0 0
    %191 = vmatpush.bf16.msra.mxu0 %v95
    %192 = vmatmul.bf16.gmra.mxu0 %v77
    %v193 = vpop.f32.mrf.mxu0
    %v194 = vadd.f32 %v64, %v193
    %v195 = vpop.f32.mrf.mxu0
    %v196 = vadd.f32 %v64, %v195
    %197 = vmatmul.bf16.gmra.mxu0 %v80
    %v198 = vpop.f32.mrf.mxu0
    %v199 = vadd.f32 %v64, %v198
    %v200 = vpop.f32.mrf.mxu0
    %v201 = vadd.f32 %v64, %v200
    %202 = vmatmul.bf16.gmra.mxu0 %v83
    %v203 = vpop.f32.mrf.mxu0
    %v204 = vadd.f32 %v64, %v203
    %v205 = vpop.f32.mrf.mxu0
    %v206 = vadd.f32 %v64, %v205
    %207 = vmatmul.bf16.gmra.mxu0 %v86
    %v208 = vpop.f32.mrf.mxu0
    %v209 = vadd.f32 %v64, %v208
    %v210 = vpop.f32.mrf.mxu0
    %v211 = vadd.f32 %v64, %v210
    %212 = vdwg.mxu0
    %213 = vst [vmem:[#allocation2] sm:$0xff] %v107
    %214 = vst [vmem:[#allocation2 + $0x8] sm:$0xff] %v136
    %215 = vst [vmem:[#allocation2 + $0x10] sm:$0xff] %v165
    %216 = vst [vmem:[#allocation2 + $0x18] sm:$0xff] %v194
    %217 = vst [vmem:[#allocation2 + $0x20] sm:$0xff] %v109
    %218 = vst [vmem:[#allocation2 + $0x28] sm:$0xff] %v138
    %219 = vst [vmem:[#allocation2 + $0x30] sm:$0xff] %v167
    %220 = vst [vmem:[#allocation2 + $0x38] sm:$0xff] %v196
    %221 = vst [vmem:[#allocation2 + $0x40] sm:$0xff] %v112
    %222 = vst [vmem:[#allocation2 + $0x48] sm:$0xff] %v141
    %223 = vst [vmem:[#allocation2 + $0x50] sm:$0xff] %v170
    %224 = vst [vmem:[#allocation2 + $0x58] sm:$0xff] %v199
    %225 = vst [vmem:[#allocation2 + $0x60] sm:$0xff] %v114
    %226 = vst [vmem:[#allocation2 + $0x68] sm:$0xff] %v143
    %227 = vst [vmem:[#allocation2 + $0x70] sm:$0xff] %v172
    %228 = vst [vmem:[#allocation2 + $0x78] sm:$0xff] %v201
    %229 = vst [vmem:[#allocation2 + $0x80] sm:$0xff] %v117
    %230 = vst [vmem:[#allocation2 + $0x88] sm:$0xff] %v146
    %231 = vst [vmem:[#allocation2 + $0x90] sm:$0xff] %v175
    %232 = vst [vmem:[#allocation2 + $0x98] sm:$0xff] %v204
    %233 = vst [vmem:[#allocation2 + $0xa0] sm:$0xff] %v119
    %234 = vst [vmem:[#allocation2 + $0xa8] sm:$0xff] %v148
    %235 = vst [vmem:[#allocation2 + $0xb0] sm:$0xff] %v177
    %236 = vst [vmem:[#allocation2 + $0xb8] sm:$0xff] %v206
    %237 = vst [vmem:[#allocation2 + $0xc0] sm:$0xff] %v122
    %238 = vst [vmem:[#allocation2 + $0xc8] sm:$0xff] %v151
    %239 = vst [vmem:[#allocation2 + $0xd0] sm:$0xff] %v180
    %240 = vst [vmem:[#allocation2 + $0xd8] sm:$0xff] %v209
    %241 = vst [vmem:[#allocation2 + $0xe0] sm:$0xff] %v124
    %242 = vst [vmem:[#allocation2 + $0xe8] sm:$0xff] %v153
    %243 = vst [vmem:[#allocation2 + $0xf0] sm:$0xff] %v182
    %244 = vst [vmem:[#allocation2 + $0xf8] sm:$0xff] %v211
    %v245 = vld [vmem:[%s1] sm:$0xff]
    %v246 = vld [vmem:[%s2] sm:$0xff]
    loop: start=0, step=1, limit=8
    $region46: #{lstm_model_forward.1} parent=1 // loop_pre_header
      _
    $region47: #{lstm_model_forward.1} parent=1 // loop_header
      %s248 = sphi 0, %s252
      %p249 = scmp.ge.s32.totalorder %s248, 8
      %v253 = vphi %v245, %v576
      %v254 = vphi %v246, %v574
    $region48: #{lstm_model_forward.1} parent=1 // loop_header_branch
      %251 = sbr.rel (%p249) target = $region52
    $region49: #{lstm_model_forward.1} parent=1 // loop_body
      %s255 = smul.u32 %s248, 8
      %s256 = sshra.s32 %s255, 3
      %s257 = sand.u32 %s255, 7
      %s258 = smul.u32 %s256, 4
      %s259 = smul.addr %s258, 8
      %s260 = scalar_lea.vmem [#allocation2], %s259
      %v261 = vld [vmem:[%s260] sm:$0xff]
      %v262 = vld [vmem:[%s260 + $0x8] sm:$0xff]
      %v263 = vld [vmem:[%s260 + $0x10] sm:$0xff]
      %v264 = vld [vmem:[%s260 + $0x18] sm:$0xff]
      %v265 = vpack.c.bf16 %v253, %v253
      %v266 = vld [vmem:[%s4] sm:$0xff]
      %v267 = vld [vmem:[%s4 + $0x8] sm:$0xff]
      %v268 = vld [vmem:[%s4 + $0x10] sm:$0xff]
      %v269 = vld [vmem:[%s4 + $0x18] sm:$0xff]
      %v270 = vld [vmem:[%s4 + $0x20] sm:$0xff]
      %v271 = vld [vmem:[%s4 + $0x28] sm:$0xff]
      %v272 = vld [vmem:[%s4 + $0x30] sm:$0xff]
      %v273 = vld [vmem:[%s4 + $0x38] sm:$0xff]
      %v274 = vld [vmem:[%s4 + $0x40] sm:$0xff]
      %v275 = vld [vmem:[%s4 + $0x48] sm:$0xff]
      %v276 = vld [vmem:[%s4 + $0x50] sm:$0xff]
      %v277 = vld [vmem:[%s4 + $0x58] sm:$0xff]
      %v278 = vld [vmem:[%s4 + $0x60] sm:$0xff]
      %v279 = vld [vmem:[%s4 + $0x68] sm:$0xff]
      %v280 = vld [vmem:[%s4 + $0x70] sm:$0xff]
      %v281 = vld [vmem:[%s4 + $0x78] sm:$0xff]
      %v282 = vld [vmem:[%s4 + $0x80] sm:$0xff]
      %v283 = vld [vmem:[%s4 + $0x88] sm:$0xff]
      %v284 = vld [vmem:[%s4 + $0x90] sm:$0xff]
      %v285 = vld [vmem:[%s4 + $0x98] sm:$0xff]
      %v286 = vld [vmem:[%s4 + $0xa0] sm:$0xff]
      %v287 = vld [vmem:[%s4 + $0xa8] sm:$0xff]
      %v288 = vld [vmem:[%s4 + $0xb0] sm:$0xff]
      %v289 = vld [vmem:[%s4 + $0xb8] sm:$0xff]
      %v290 = vld [vmem:[%s4 + $0xc0] sm:$0xff]
      %v291 = vld [vmem:[%s4 + $0xc8] sm:$0xff]
      %v292 = vld [vmem:[%s4 + $0xd0] sm:$0xff]
      %v293 = vld [vmem:[%s4 + $0xd8] sm:$0xff]
      %v294 = vld [vmem:[%s4 + $0xe0] sm:$0xff]
      %v295 = vld [vmem:[%s4 + $0xe8] sm:$0xff]
      %v296 = vld [vmem:[%s4 + $0xf0] sm:$0xff]
      %v297 = vld [vmem:[%s4 + $0xf8] sm:$0xff]
      %v330 = vunpack.c.l.b16 %v266
      %v331 = vunpack.c.h.b16 %v266
      %v332 = vunpack.c.l.b16 %v267
      %v333 = vunpack.c.h.b16 %v267
      %v334 = vunpack.c.l.b16 %v268
      %v335 = vunpack.c.h.b16 %v268
      %v336 = vunpack.c.l.b16 %v269
      %v337 = vunpack.c.h.b16 %v269
      %v338 = vunpack.c.l.b16 %v270
      %v339 = vunpack.c.h.b16 %v270
      %v340 = vunpack.c.l.b16 %v271
      %v341 = vunpack.c.h.b16 %v271
      %v342 = vunpack.c.l.b16 %v272
      %v343 = vunpack.c.h.b16 %v272
      %v344 = vunpack.c.l.b16 %v273
      %v345 = vunpack.c.h.b16 %v273
      %v346 = vunpack.c.l.b16 %v274
      %v347 = vunpack.c.h.b16 %v274
      %v348 = vunpack.c.l.b16 %v275
      %v349 = vunpack.c.h.b16 %v275
      %v350 = vunpack.c.l.b16 %v276
      %v351 = vunpack.c.h.b16 %v276
      %v352 = vunpack.c.l.b16 %v277
      %v353 = vunpack.c.h.b16 %v277
      %v354 = vunpack.c.l.b16 %v278
      %v355 = vunpack.c.h.b16 %v278
      %v356 = vunpack.c.l.b16 %v279
      %v357 = vunpack.c.h.b16 %v279
      %v358 = vunpack.c.l.b16 %v280
      %v359 = vunpack.c.h.b16 %v280
      %v360 = vunpack.c.l.b16 %v281
      %v361 = vunpack.c.h.b16 %v281
      %v362 = vunpack.c.l.b16 %v282
      %v363 = vunpack.c.h.b16 %v282
      %v364 = vunpack.c.l.b16 %v283
      %v365 = vunpack.c.h.b16 %v283
      %v366 = vunpack.c.l.b16 %v284
      %v367 = vunpack.c.h.b16 %v284
      %v368 = vunpack.c.l.b16 %v285
      %v369 = vunpack.c.h.b16 %v285
      %v370 = vunpack.c.l.b16 %v286
      %v371 = vunpack.c.h.b16 %v286
      %v372 = vunpack.c.l.b16 %v287
      %v373 = vunpack.c.h.b16 %v287
      %v374 = vunpack.c.l.b16 %v288
      %v375 = vunpack.c.h.b16 %v288
      %v376 = vunpack.c.l.b16 %v289
      %v377 = vunpack.c.h.b16 %v289
      %v378 = vunpack.c.l.b16 %v290
      %v379 = vunpack.c.h.b16 %v290
      %v380 = vunpack.c.l.b16 %v291
      %v381 = vunpack.c.h.b16 %v291
      %v382 = vunpack.c.l.b16 %v292
      %v383 = vunpack.c.h.b16 %v292
      %v384 = vunpack.c.l.b16 %v293
      %v385 = vunpack.c.h.b16 %v293
      %v386 = vunpack.c.l.b16 %v294
      %v387 = vunpack.c.h.b16 %v294
      %v388 = vunpack.c.l.b16 %v295
      %v389 = vunpack.c.h.b16 %v295
      %v390 = vunpack.c.l.b16 %v296
      %v391 = vunpack.c.h.b16 %v296
      %v392 = vunpack.c.l.b16 %v297
      %v393 = vunpack.c.h.b16 %v297
      %v394 = vpack.c.b16 %v334, %v330
      %v395 = vpack.c.b16 %v335, %v331
      %v396 = vpack.c.b16 %v336, %v332
      %v397 = vpack.c.b16 %v337, %v333
      %v398 = vpack.c.b16 %v342, %v338
      %v399 = vpack.c.b16 %v343, %v339
      %v400 = vpack.c.b16 %v344, %v340
      %v401 = vpack.c.b16 %v345, %v341
      %v402 = vpack.c.b16 %v350, %v346
      %v403 = vpack.c.b16 %v351, %v347
      %v404 = vpack.c.b16 %v352, %v348
      %v405 = vpack.c.b16 %v353, %v349
      %v406 = vpack.c.b16 %v358, %v354
      %v407 = vpack.c.b16 %v359, %v355
      %v408 = vpack.c.b16 %v360, %v356
      %v409 = vpack.c.b16 %v361, %v357
      %v410 = vpack.c.b16 %v366, %v362
      %v411 = vpack.c.b16 %v367, %v363
      %v412 = vpack.c.b16 %v368, %v364
      %v413 = vpack.c.b16 %v369, %v365
      %v414 = vpack.c.b16 %v374, %v370
      %v415 = vpack.c.b16 %v375, %v371
      %v416 = vpack.c.b16 %v376, %v372
      %v417 = vpack.c.b16 %v377, %v373
      %v418 = vpack.c.b16 %v382, %v378
      %v419 = vpack.c.b16 %v383, %v379
      %v420 = vpack.c.b16 %v384, %v380
      %v421 = vpack.c.b16 %v385, %v381
      %v422 = vpack.c.b16 %v390, %v386
      %v423 = vpack.c.b16 %v391, %v387
      %v424 = vpack.c.b16 %v392, %v388
      %v425 = vpack.c.b16 %v393, %v389
      %458 = vmatpush.bf16.msra.mxu0 %v422
      %459 = vmatpush.bf16.msra.mxu0 %v418
      %460 = vmatpush.bf16.msra.mxu0 %v414
      %461 = vmatpush.bf16.msra.mxu0 %v410
      %462 = vmatpush.bf16.msra.mxu0 %v406
      %463 = vmatpush.bf16.msra.mxu0 %v402
      %464 = vmatpush.bf16.msra.mxu0 %v398
      %465 = vmatpush.bf16.msra.mxu0 %v394
      %466 = vmatmul.bf16.gmra.mxu0 %v265
      %v467 = vpop.f32.mrf.mxu0
      %v468 = vadd.f32 0.0, %v467
      %v469 = vpop.f32.mrf.mxu0
      %470 = vdwg.mxu0
      %471 = vmatpush.bf16.msra.mxu0 %v423
      %472 = vmatpush.bf16.msra.mxu0 %v419
      %473 = vmatpush.bf16.msra.mxu0 %v415
      %474 = vmatpush.bf16.msra.mxu0 %v411
      %475 = vmatpush.bf16.msra.mxu0 %v407
      %476 = vmatpush.bf16.msra.mxu0 %v403
      %477 = vmatpush.bf16.msra.mxu0 %v399
      %478 = vmatpush.bf16.msra.mxu0 %v395
      %479 = vmatmul.bf16.gmra.mxu0 %v265
      %v480 = vpop.f32.mrf.mxu0
      %v481 = vadd.f32 0.0, %v480
      %v482 = vpop.f32.mrf.mxu0
      %483 = vdwg.mxu0
      %484 = vmatpush.bf16.msra.mxu0 %v424
      %485 = vmatpush.bf16.msra.mxu0 %v420
      %486 = vmatpush.bf16.msra.mxu0 %v416
      %487 = vmatpush.bf16.msra.mxu0 %v412
      %488 = vmatpush.bf16.msra.mxu0 %v408
      %489 = vmatpush.bf16.msra.mxu0 %v404
      %490 = vmatpush.bf16.msra.mxu0 %v400
      %491 = vmatpush.bf16.msra.mxu0 %v396
      %492 = vmatmul.bf16.gmra.mxu0 %v265
      %v493 = vpop.f32.mrf.mxu0
      %v494 = vadd.f32 0.0, %v493
      %v495 = vpop.f32.mrf.mxu0
      %496 = vdwg.mxu0
      %497 = vmatpush.bf16.msra.mxu0 %v425
      %498 = vmatpush.bf16.msra.mxu0 %v421
      %499 = vmatpush.bf16.msra.mxu0 %v417
      %500 = vmatpush.bf16.msra.mxu0 %v413
      %501 = vmatpush.bf16.msra.mxu0 %v409
      %502 = vmatpush.bf16.msra.mxu0 %v405
      %503 = vmatpush.bf16.msra.mxu0 %v401
      %504 = vmatpush.bf16.msra.mxu0 %v397
      %505 = vmatmul.bf16.gmra.mxu0 %v265
      %v506 = vpop.f32.mrf.mxu0
      %v507 = vadd.f32 0.0, %v506
      %v508 = vpop.f32.mrf.mxu0
      %509 = vdwg.mxu0
      %v510 = vadd.f32 %v261, %v468
      %v511 = vadd.f32 %v262, %v481
      %v512 = vadd.f32 %v263, %v494
      %v513 = vadd.f32 %v264, %v507
      %v514 = vxor.u32 %v510, 2147483648
      %v515 = vmul.f32 %v514, 1.442695
      %v516 = vpow.pop %v515
      %v517 = vadd.f32 %v516, 1.0
      %v518 = vrcp.pop %v517
      %v519 = vmul.f32 %v517, %v518
      %v520 = vsub.f32 1.0, %v519
      %v521 = vmul.f32 %v518, %v520
      %v522 = vadd.f32 %v518, %v521
      %vm523 = vweird.f32 %v517
      %vm524 = vweird.f32 %v518
      %vm525 = vmor %vm523, %vm524
      %v526 = vsel %vm525, %v518, %v522
      %v527 = vand.u32 2147483647, %v517
      %vm528 = vcmp.eq.f32.partialorder %v527, 8.507059e+37
      %v529 = vand.u32 %v517, 2147483648
      %v530 = vor.u32 1.1754944e-38, %v529
      %v531 = vsel %vm528, %v530, %v526
      %v532 = vmul.f32 1.0, %v531
      %v533 = vxor.u32 %v511, 2147483648
      %v534 = vmul.f32 %v533, 1.442695
      %v535 = vpow.pop %v534
      %v536 = vadd.f32 %v535, 1.0
      %v537 = vrcp.pop %v536
      %v538 = vmul.f32 %v536, %v537
      %v539 = vsub.f32 1.0, %v538
      %v540 = vmul.f32 %v537, %v539
      %v541 = vadd.f32 %v537, %v540
      %vm542 = vweird.f32 %v536
      %vm543 = vweird.f32 %v537
      %vm544 = vmor %vm542, %vm543
      %v545 = vsel %vm544, %v537, %v541
      %v546 = vand.u32 2147483647, %v536
      %vm547 = vcmp.eq.f32.partialorder %v546, 8.507059e+37
      %v548 = vand.u32 %v536, 2147483648
      %v549 = vor.u32 1.1754944e-38, %v548
      %v550 = vsel %vm547, %v549, %v545
      %v551 = vmul.f32 1.0, %v550
      %v552 = vtanh.pop %v512
      %v553 = vxor.u32 %v513, 2147483648
      %v554 = vmul.f32 %v553, 1.442695
      %v555 = vpow.pop %v554
      %v556 = vadd.f32 %v555, 1.0
      %v557 = vrcp.pop %v556
      %v558 = vmul.f32 %v556, %v557
      %v559 = vsub.f32 1.0, %v558
      %v560 = vmul.f32 %v557, %v559
      %v561 = vadd.f32 %v557, %v560
      %vm562 = vweird.f32 %v556
      %vm563 = vweird.f32 %v557
      %vm564 = vmor %vm562, %vm563
      %v565 = vsel %vm564, %v557, %v561
      %v566 = vand.u32 2147483647, %v556
      %vm567 = vcmp.eq.f32.partialorder %v566, 8.507059e+37
      %v568 = vand.u32 %v556, 2147483648
      %v569 = vor.u32 1.1754944e-38, %v568
      %v570 = vsel %vm567, %v569, %v565
      %v571 = vmul.f32 1.0, %v570
      %v572 = vmul.f32 %v551, %v254
      %v573 = vmul.f32 %v532, %v552
      %v574 = vadd.f32 %v572, %v573
      %v575 = vtanh.pop %v574
      %v576 = vmul.f32 %v571, %v575
      %s577 = scalar_lea.vmem [#allocation3], %s255
      %578 = vst [vmem:[%s577] sm:$0xff] %v576
    $region50: #{lstm_model_forward.1} parent=1 // loop_footer
      %s252 = sadd.s32 1, %s248
    $region51: #{lstm_model_forward.1} parent=1 // loop_footer_branch
      %247 = sbr.rel target = $region47
    $region52: #{lstm_model_forward.1} parent=1 // loop_exit
      _
    %579 = vst [vmem:[#allocation5] sm:$0xff] %v253
    %580 = vst [vmem:[#allocation7] sm:$0xff] %v254
    %v581 = vld [vmem:[%s8] sm:$0xf]
    %v582 = vld [vmem:[#allocation3] sm:$0xff]
    %v583 = vld [vmem:[#allocation3 + $0x8] sm:$0xff]
    %v584 = vld [vmem:[#allocation3 + $0x10] sm:$0xff]
    %v585 = vld [vmem:[#allocation3 + $0x18] sm:$0xff]
    %v586 = vld [vmem:[#allocation3 + $0x20] sm:$0xff]
    %v587 = vld [vmem:[#allocation3 + $0x28] sm:$0xff]
    %v588 = vld [vmem:[#allocation3 + $0x30] sm:$0xff]
    %v589 = vld [vmem:[#allocation3 + $0x38] sm:$0xff]
    %v590 = vpack.c.bf16 %v583, %v582
    %v591 = vpack.c.bf16 %v585, %v584
    %v592 = vpack.c.bf16 %v587, %v586
    %v593 = vpack.c.bf16 %v589, %v588
    %v594 = vld [vmem:[%s6] sm:$0xff]
    %v595 = vld [vmem:[%s6 + $0x8] sm:$0xff]
    %v596 = vld [vmem:[%s6 + $0x10] sm:$0xff]
    %v597 = vld [vmem:[%s6 + $0x18] sm:$0xff]
    %v598 = vld [vmem:[%s6 + $0x20] sm:$0xff]
    %v599 = vld [vmem:[%s6 + $0x28] sm:$0xff]
    %v600 = vld [vmem:[%s6 + $0x30] sm:$0xff]
    %v601 = vld [vmem:[%s6 + $0x38] sm:$0xff]
    %v602 = vld [vmem:[%s6 + $0x40] sm:$0xff]
    %v603 = vld [vmem:[%s6 + $0x48] sm:$0xff]
    %v604 = vld [vmem:[%s6 + $0x50] sm:$0xff]
    %v605 = vld [vmem:[%s6 + $0x58] sm:$0xff]
    %v606 = vld [vmem:[%s6 + $0x60] sm:$0xff]
    %v607 = vld [vmem:[%s6 + $0x68] sm:$0xff]
    %v608 = vld [vmem:[%s6 + $0x70] sm:$0xff]
    %v609 = vld [vmem:[%s6 + $0x78] sm:$0xff]
    %v610 = vld [vmem:[%s6 + $0x80] sm:$0xff]
    %v611 = vld [vmem:[%s6 + $0x88] sm:$0xff]
    %v612 = vld [vmem:[%s6 + $0x90] sm:$0xff]
    %v613 = vld [vmem:[%s6 + $0x98] sm:$0xff]
    %v614 = vld [vmem:[%s6 + $0xa0] sm:$0xff]
    %v615 = vld [vmem:[%s6 + $0xa8] sm:$0xff]
    %v616 = vld [vmem:[%s6 + $0xb0] sm:$0xff]
    %v617 = vld [vmem:[%s6 + $0xb8] sm:$0xff]
    %v618 = vld [vmem:[%s6 + $0xc0] sm:$0xff]
    %v619 = vld [vmem:[%s6 + $0xc8] sm:$0xff]
    %v620 = vld [vmem:[%s6 + $0xd0] sm:$0xff]
    %v621 = vld [vmem:[%s6 + $0xd8] sm:$0xff]
    %v622 = vld [vmem:[%s6 + $0xe0] sm:$0xff]
    %v623 = vld [vmem:[%s6 + $0xe8] sm:$0xff]
    %v624 = vld [vmem:[%s6 + $0xf0] sm:$0xff]
    %v625 = vld [vmem:[%s6 + $0xf8] sm:$0xff]
    %v627 = vperm.slane %v581, 0
    %v628 = vperm.slane %v581, 1
    %v629 = vperm.slane %v581, 2
    %v630 = vperm.slane %v581, 3
    %v667 = vunpack.c.l.b16 %v594
    %v668 = vunpack.c.h.b16 %v594
    %v669 = vunpack.c.l.b16 %v595
    %v670 = vunpack.c.h.b16 %v595
    %v671 = vunpack.c.l.b16 %v596
    %v672 = vunpack.c.h.b16 %v596
    %v673 = vunpack.c.l.b16 %v597
    %v674 = vunpack.c.h.b16 %v597
    %v675 = vunpack.c.l.b16 %v598
    %v676 = vunpack.c.h.b16 %v598
    %v677 = vunpack.c.l.b16 %v599
    %v678 = vunpack.c.h.b16 %v599
    %v679 = vunpack.c.l.b16 %v600
    %v680 = vunpack.c.h.b16 %v600
    %v681 = vunpack.c.l.b16 %v601
    %v682 = vunpack.c.h.b16 %v601
    %v683 = vunpack.c.l.b16 %v602
    %v684 = vunpack.c.h.b16 %v602
    %v685 = vunpack.c.l.b16 %v603
    %v686 = vunpack.c.h.b16 %v603
    %v687 = vunpack.c.l.b16 %v604
    %v688 = vunpack.c.h.b16 %v604
    %v689 = vunpack.c.l.b16 %v605
    %v690 = vunpack.c.h.b16 %v605
    %v691 = vunpack.c.l.b16 %v606
    %v692 = vunpack.c.h.b16 %v606
    %v693 = vunpack.c.l.b16 %v607
    %v694 = vunpack.c.h.b16 %v607
    %v695 = vunpack.c.l.b16 %v608
    %v696 = vunpack.c.h.b16 %v608
    %v697 = vunpack.c.l.b16 %v609
    %v698 = vunpack.c.h.b16 %v609
    %v699 = vunpack.c.l.b16 %v610
    %v700 = vunpack.c.h.b16 %v610
    %v701 = vunpack.c.l.b16 %v611
    %v702 = vunpack.c.h.b16 %v611
    %v703 = vunpack.c.l.b16 %v612
    %v704 = vunpack.c.h.b16 %v612
    %v705 = vunpack.c.l.b16 %v613
    %v706 = vunpack.c.h.b16 %v613
    %v707 = vunpack.c.l.b16 %v614
    %v708 = vunpack.c.h.b16 %v614
    %v709 = vunpack.c.l.b16 %v615
    %v710 = vunpack.c.h.b16 %v615
    %v711 = vunpack.c.l.b16 %v616
    %v712 = vunpack.c.h.b16 %v616
    %v713 = vunpack.c.l.b16 %v617
    %v714 = vunpack.c.h.b16 %v617
    %v715 = vunpack.c.l.b16 %v618
    %v716 = vunpack.c.h.b16 %v618
    %v717 = vunpack.c.l.b16 %v619
    %v718 = vunpack.c.h.b16 %v619
    %v719 = vunpack.c.l.b16 %v620
    %v720 = vunpack.c.h.b16 %v620
    %v721 = vunpack.c.l.b16 %v621
    %v722 = vunpack.c.h.b16 %v621
    %v723 = vunpack.c.l.b16 %v622
    %v724 = vunpack.c.h.b16 %v622
    %v725 = vunpack.c.l.b16 %v623
    %v726 = vunpack.c.h.b16 %v623
    %v727 = vunpack.c.l.b16 %v624
    %v728 = vunpack.c.h.b16 %v624
    %v729 = vunpack.c.l.b16 %v625
    %v730 = vunpack.c.h.b16 %v625
    %v731 = vpack.c.b16 %v671, %v667
    %v732 = vpack.c.b16 %v672, %v668
    %v733 = vpack.c.b16 %v673, %v669
    %v734 = vpack.c.b16 %v674, %v670
    %v735 = vpack.c.b16 %v679, %v675
    %v736 = vpack.c.b16 %v680, %v676
    %v737 = vpack.c.b16 %v681, %v677
    %v738 = vpack.c.b16 %v682, %v678
    %v739 = vpack.c.b16 %v687, %v683
    %v740 = vpack.c.b16 %v688, %v684
    %v741 = vpack.c.b16 %v689, %v685
    %v742 = vpack.c.b16 %v690, %v686
    %v743 = vpack.c.b16 %v695, %v691
    %v744 = vpack.c.b16 %v696, %v692
    %v745 = vpack.c.b16 %v697, %v693
    %v746 = vpack.c.b16 %v698, %v694
    %v747 = vpack.c.b16 %v703, %v699
    %v748 = vpack.c.b16 %v704, %v700
    %v749 = vpack.c.b16 %v705, %v701
    %v750 = vpack.c.b16 %v706, %v702
    %v751 = vpack.c.b16 %v711, %v707
    %v752 = vpack.c.b16 %v712, %v708
    %v753 = vpack.c.b16 %v713, %v709
    %v754 = vpack.c.b16 %v714, %v710
    %v755 = vpack.c.b16 %v719, %v715
    %v756 = vpack.c.b16 %v720, %v716
    %v757 = vpack.c.b16 %v721, %v717
    %v758 = vpack.c.b16 %v722, %v718
    %v759 = vpack.c.b16 %v727, %v723
    %v760 = vpack.c.b16 %v728, %v724
    %v761 = vpack.c.b16 %v729, %v725
    %v762 = vpack.c.b16 %v730, %v726
    %795 = vmatpush.bf16.msra.mxu0 %v759
    %796 = vmatpush.bf16.msra.mxu0 %v755
    %797 = vmatpush.bf16.msra.mxu0 %v751
    %798 = vmatpush.bf16.msra.mxu0 %v747
    %799 = vmatpush.bf16.msra.mxu0 %v743
    %800 = vmatpush.bf16.msra.mxu0 %v739
    %801 = vmatpush.bf16.msra.mxu0 %v735
    %802 = vmatpush.bf16.msra.mxu0 %v731
    %803 = vmatmul.bf16.gmra.mxu0 %v590
    %v804 = vpop.f32.mrf.mxu0
    %v805 = vadd.f32 %v627, %v804
    %v806 = vpop.f32.mrf.mxu0
    %v807 = vadd.f32 %v627, %v806
    %808 = vmatmul.bf16.gmra.mxu0 %v591
    %v809 = vpop.f32.mrf.mxu0
    %v810 = vadd.f32 %v627, %v809
    %v811 = vpop.f32.mrf.mxu0
    %v812 = vadd.f32 %v627, %v811
    %813 = vmatmul.bf16.gmra.mxu0 %v592
    %v814 = vpop.f32.mrf.mxu0
    %v815 = vadd.f32 %v627, %v814
    %v816 = vpop.f32.mrf.mxu0
    %v817 = vadd.f32 %v627, %v816
    %818 = vmatmul.bf16.gmra.mxu0 %v593
    %v819 = vpop.f32.mrf.mxu0
    %v820 = vadd.f32 %v627, %v819
    %v821 = vpop.f32.mrf.mxu0
    %v822 = vadd.f32 %v627, %v821
    %823 = vdwg.mxu0
    %824 = vmatpush.bf16.msra.mxu0 %v760
    %825 = vmatpush.bf16.msra.mxu0 %v756
    %826 = vmatpush.bf16.msra.mxu0 %v752
    %827 = vmatpush.bf16.msra.mxu0 %v748
    %828 = vmatpush.bf16.msra.mxu0 %v744
    %829 = vmatpush.bf16.msra.mxu0 %v740
    %830 = vmatpush.bf16.msra.mxu0 %v736
    %831 = vmatpush.bf16.msra.mxu0 %v732
    %832 = vmatmul.bf16.gmra.mxu0 %v590
    %v833 = vpop.f32.mrf.mxu0
    %v834 = vadd.f32 %v628, %v833
    %v835 = vpop.f32.mrf.mxu0
    %v836 = vadd.f32 %v628, %v835
    %837 = vmatmul.bf16.gmra.mxu0 %v591
    %v838 = vpop.f32.mrf.mxu0
    %v839 = vadd.f32 %v628, %v838
    %v840 = vpop.f32.mrf.mxu0
    %v841 = vadd.f32 %v628, %v840
    %842 = vmatmul.bf16.gmra.mxu0 %v592
    %v843 = vpop.f32.mrf.mxu0
    %v844 = vadd.f32 %v628, %v843
    %v845 = vpop.f32.mrf.mxu0
    %v846 = vadd.f32 %v628, %v845
    %847 = vmatmul.bf16.gmra.mxu0 %v593
    %v848 = vpop.f32.mrf.mxu0
    %v849 = vadd.f32 %v628, %v848
    %v850 = vpop.f32.mrf.mxu0
    %v851 = vadd.f32 %v628, %v850
    %852 = vdwg.mxu0
    %853 = vmatpush.bf16.msra.mxu0 %v761
    %854 = vmatpush.bf16.msra.mxu0 %v757
    %855 = vmatpush.bf16.msra.mxu0 %v753
    %856 = vmatpush.bf16.msra.mxu0 %v749
    %857 = vmatpush.bf16.msra.mxu0 %v745
    %858 = vmatpush.bf16.msra.mxu0 %v741
    %859 = vmatpush.bf16.msra.mxu0 %v737
    %860 = vmatpush.bf16.msra.mxu0 %v733
    %861 = vmatmul.bf16.gmra.mxu0 %v590
    %v862 = vpop.f32.mrf.mxu0
    %v863 = vadd.f32 %v629, %v862
    %v864 = vpop.f32.mrf.mxu0
    %v865 = vadd.f32 %v629, %v864
    %866 = vmatmul.bf16.gmra.mxu0 %v591
    %v867 = vpop.f32.mrf.mxu0
    %v868 = vadd.f32 %v629, %v867
    %v869 = vpop.f32.mrf.mxu0
    %v870 = vadd.f32 %v629, %v869
    %871 = vmatmul.bf16.gmra.mxu0 %v592
    %v872 = vpop.f32.mrf.mxu0
    %v873 = vadd.f32 %v629, %v872
    %v874 = vpop.f32.mrf.mxu0
    %v875 = vadd.f32 %v629, %v874
    %876 = vmatmul.bf16.gmra.mxu0 %v593
    %v877 = vpop.f32.mrf.mxu0
    %v878 = vadd.f32 %v629, %v877
    %v879 = vpop.f32.mrf.mxu0
    %v880 = vadd.f32 %v629, %v879
    %881 = vdwg.mxu0
    %882 = vmatpush.bf16.msra.mxu0 %v762
    %883 = vmatpush.bf16.msra.mxu0 %v758
    %884 = vmatpush.bf16.msra.mxu0 %v754
    %885 = vmatpush.bf16.msra.mxu0 %v750
    %886 = vmatpush.bf16.msra.mxu0 %v746
    %887 = vmatpush.bf16.msra.mxu0 %v742
    %888 = vmatpush.bf16.msra.mxu0 %v738
    %889 = vmatpush.bf16.msra.mxu0 %v734
    %890 = vmatmul.bf16.gmra.mxu0 %v590
    %v891 = vpop.f32.mrf.mxu0
    %v892 = vadd.f32 %v630, %v891
    %v893 = vpop.f32.mrf.mxu0
    %v894 = vadd.f32 %v630, %v893
    %895 = vmatmul.bf16.gmra.mxu0 %v591
    %v896 = vpop.f32.mrf.mxu0
    %v897 = vadd.f32 %v630, %v896
    %v898 = vpop.f32.mrf.mxu0
    %v899 = vadd.f32 %v630, %v898
    %900 = vmatmul.bf16.gmra.mxu0 %v592
    %v901 = vpop.f32.mrf.mxu0
    %v902 = vadd.f32 %v630, %v901
    %v903 = vpop.f32.mrf.mxu0
    %v904 = vadd.f32 %v630, %v903
    %905 = vmatmul.bf16.gmra.mxu0 %v593
    %v906 = vpop.f32.mrf.mxu0
    %v907 = vadd.f32 %v630, %v906
    %v908 = vpop.f32.mrf.mxu0
    %v909 = vadd.f32 %v630, %v908
    %910 = vdwg.mxu0
    %911 = vst [vmem:[#allocation2] sm:$0xff] %v805
    %912 = vst [vmem:[#allocation2 + $0x8] sm:$0xff] %v834
    %913 = vst [vmem:[#allocation2 + $0x10] sm:$0xff] %v863
    %914 = vst [vmem:[#allocation2 + $0x18] sm:$0xff] %v892
    %915 = vst [vmem:[#allocation2 + $0x20] sm:$0xff] %v807
    %916 = vst [vmem:[#allocation2 + $0x28] sm:$0xff] %v836
    %917 = vst [vmem:[#allocation2 + $0x30] sm:$0xff] %v865
    %918 = vst [vmem:[#allocation2 + $0x38] sm:$0xff] %v894
    %919 = vst [vmem:[#allocation2 + $0x40] sm:$0xff] %v810
    %920 = vst [vmem:[#allocation2 + $0x48] sm:$0xff] %v839
    %921 = vst [vmem:[#allocation2 + $0x50] sm:$0xff] %v868
    %922 = vst [vmem:[#allocation2 + $0x58] sm:$0xff] %v897
    %923 = vst [vmem:[#allocation2 + $0x60] sm:$0xff] %v812
    %924 = vst [vmem:[#allocation2 + $0x68] sm:$0xff] %v841
    %925 = vst [vmem:[#allocation2 + $0x70] sm:$0xff] %v870
    %926 = vst [vmem:[#allocation2 + $0x78] sm:$0xff] %v899
    %927 = vst [vmem:[#allocation2 + $0x80] sm:$0xff] %v815
    %928 = vst [vmem:[#allocation2 + $0x88] sm:$0xff] %v844
    %929 = vst [vmem:[#allocation2 + $0x90] sm:$0xff] %v873
    %930 = vst [vmem:[#allocation2 + $0x98] sm:$0xff] %v902
    %931 = vst [vmem:[#allocation2 + $0xa0] sm:$0xff] %v817
    %932 = vst [vmem:[#allocation2 + $0xa8] sm:$0xff] %v846
    %933 = vst [vmem:[#allocation2 + $0xb0] sm:$0xff] %v875
    %934 = vst [vmem:[#allocation2 + $0xb8] sm:$0xff] %v904
    %935 = vst [vmem:[#allocation2 + $0xc0] sm:$0xff] %v820
    %936 = vst [vmem:[#allocation2 + $0xc8] sm:$0xff] %v849
    %937 = vst [vmem:[#allocation2 + $0xd0] sm:$0xff] %v878
    %938 = vst [vmem:[#allocation2 + $0xd8] sm:$0xff] %v907
    %939 = vst [vmem:[#allocation2 + $0xe0] sm:$0xff] %v822
    %940 = vst [vmem:[#allocation2 + $0xe8] sm:$0xff] %v851
    %941 = vst [vmem:[#allocation2 + $0xf0] sm:$0xff] %v880
    %942 = vst [vmem:[#allocation2 + $0xf8] sm:$0xff] %v909
    %s943 = scalar_lea.vmem %s1, 8
    %v944 = vld [vmem:[%s943] sm:$0xff]
    %s945 = scalar_lea.vmem %s2, 8
    %v946 = vld [vmem:[%s945] sm:$0xff]
    loop: start=0, step=1, limit=8
    $region53: #{lstm_model_forward.1} parent=1 // loop_pre_header
      _
    $region54: #{lstm_model_forward.1} parent=1 // loop_header
      %s948 = sphi 0, %s952
      %p949 = scmp.ge.s32.totalorder %s948, 8
      %v953 = vphi %v944, %v1276
      %v954 = vphi %v946, %v1274
    $region55: #{lstm_model_forward.1} parent=1 // loop_header_branch
      %951 = sbr.rel (%p949) target = $region59
    $region56: #{lstm_model_forward.1} parent=1 // loop_body
      %s955 = smul.u32 %s948, 8
      %s956 = sshra.s32 %s955, 3
      %s957 = sand.u32 %s955, 7
      %s958 = smul.u32 %s956, 4
      %s959 = smul.addr %s958, 8
      %s960 = scalar_lea.vmem [#allocation2], %s959
      %v961 = vld [vmem:[%s960] sm:$0xff]
      %v962 = vld [vmem:[%s960 + $0x8] sm:$0xff]
      %v963 = vld [vmem:[%s960 + $0x10] sm:$0xff]
      %v964 = vld [vmem:[%s960 + $0x18] sm:$0xff]
      %v965 = vpack.c.bf16 %v953, %v953
      %v966 = vld [vmem:[%s7] sm:$0xff]
      %v967 = vld [vmem:[%s7 + $0x8] sm:$0xff]
      %v968 = vld [vmem:[%s7 + $0x10] sm:$0xff]
      %v969 = vld [vmem:[%s7 + $0x18] sm:$0xff]
      %v970 = vld [vmem:[%s7 + $0x20] sm:$0xff]
      %v971 = vld [vmem:[%s7 + $0x28] sm:$0xff]
      %v972 = vld [vmem:[%s7 + $0x30] sm:$0xff]
      %v973 = vld [vmem:[%s7 + $0x38] sm:$0xff]
      %v974 = vld [vmem:[%s7 + $0x40] sm:$0xff]
      %v975 = vld [vmem:[%s7 + $0x48] sm:$0xff]
      %v976 = vld [vmem:[%s7 + $0x50] sm:$0xff]
      %v977 = vld [vmem:[%s7 + $0x58] sm:$0xff]
      %v978 = vld [vmem:[%s7 + $0x60] sm:$0xff]
      %v979 = vld [vmem:[%s7 + $0x68] sm:$0xff]
      %v980 = vld [vmem:[%s7 + $0x70] sm:$0xff]
      %v981 = vld [vmem:[%s7 + $0x78] sm:$0xff]
      %v982 = vld [vmem:[%s7 + $0x80] sm:$0xff]
      %v983 = vld [vmem:[%s7 + $0x88] sm:$0xff]
      %v984 = vld [vmem:[%s7 + $0x90] sm:$0xff]
      %v985 = vld [vmem:[%s7 + $0x98] sm:$0xff]
      %v986 = vld [vmem:[%s7 + $0xa0] sm:$0xff]
      %v987 = vld [vmem:[%s7 + $0xa8] sm:$0xff]
      %v988 = vld [vmem:[%s7 + $0xb0] sm:$0xff]
      %v989 = vld [vmem:[%s7 + $0xb8] sm:$0xff]
      %v990 = vld [vmem:[%s7 + $0xc0] sm:$0xff]
      %v991 = vld [vmem:[%s7 + $0xc8] sm:$0xff]
      %v992 = vld [vmem:[%s7 + $0xd0] sm:$0xff]
      %v993 = vld [vmem:[%s7 + $0xd8] sm:$0xff]
      %v994 = vld [vmem:[%s7 + $0xe0] sm:$0xff]
      %v995 = vld [vmem:[%s7 + $0xe8] sm:$0xff]
      %v996 = vld [vmem:[%s7 + $0xf0] sm:$0xff]
      %v997 = vld [vmem:[%s7 + $0xf8] sm:$0xff]
      %v1030 = vunpack.c.l.b16 %v966
      %v1031 = vunpack.c.h.b16 %v966
      %v1032 = vunpack.c.l.b16 %v967
      %v1033 = vunpack.c.h.b16 %v967
      %v1034 = vunpack.c.l.b16 %v968
      %v1035 = vunpack.c.h.b16 %v968
      %v1036 = vunpack.c.l.b16 %v969
      %v1037 = vunpack.c.h.b16 %v969
      %v1038 = vunpack.c.l.b16 %v970
      %v1039 = vunpack.c.h.b16 %v970
      %v1040 = vunpack.c.l.b16 %v971
      %v1041 = vunpack.c.h.b16 %v971
      %v1042 = vunpack.c.l.b16 %v972
      %v1043 = vunpack.c.h.b16 %v972
      %v1044 = vunpack.c.l.b16 %v973
      %v1045 = vunpack.c.h.b16 %v973
      %v1046 = vunpack.c.l.b16 %v974
      %v1047 = vunpack.c.h.b16 %v974
      %v1048 = vunpack.c.l.b16 %v975
      %v1049 = vunpack.c.h.b16 %v975
      %v1050 = vunpack.c.l.b16 %v976
      %v1051 = vunpack.c.h.b16 %v976
      %v1052 = vunpack.c.l.b16 %v977
      %v1053 = vunpack.c.h.b16 %v977
      %v1054 = vunpack.c.l.b16 %v978
      %v1055 = vunpack.c.h.b16 %v978
      %v1056 = vunpack.c.l.b16 %v979
      %v1057 = vunpack.c.h.b16 %v979
      %v1058 = vunpack.c.l.b16 %v980
      %v1059 = vunpack.c.h.b16 %v980
      %v1060 = vunpack.c.l.b16 %v981
      %v1061 = vunpack.c.h.b16 %v981
      %v1062 = vunpack.c.l.b16 %v982
      %v1063 = vunpack.c.h.b16 %v982
      %v1064 = vunpack.c.l.b16 %v983
      %v1065 = vunpack.c.h.b16 %v983
      %v1066 = vunpack.c.l.b16 %v984
      %v1067 = vunpack.c.h.b16 %v984
      %v1068 = vunpack.c.l.b16 %v985
      %v1069 = vunpack.c.h.b16 %v985
      %v1070 = vunpack.c.l.b16 %v986
      %v1071 = vunpack.c.h.b16 %v986
      %v1072 = vunpack.c.l.b16 %v987
      %v1073 = vunpack.c.h.b16 %v987
      %v1074 = vunpack.c.l.b16 %v988
      %v1075 = vunpack.c.h.b16 %v988
      %v1076 = vunpack.c.l.b16 %v989
      %v1077 = vunpack.c.h.b16 %v989
      %v1078 = vunpack.c.l.b16 %v990
      %v1079 = vunpack.c.h.b16 %v990
      %v1080 = vunpack.c.l.b16 %v991
      %v1081 = vunpack.c.h.b16 %v991
      %v1082 = vunpack.c.l.b16 %v992
      %v1083 = vunpack.c.h.b16 %v992
      %v1084 = vunpack.c.l.b16 %v993
      %v1085 = vunpack.c.h.b16 %v993
      %v1086 = vunpack.c.l.b16 %v994
      %v1087 = vunpack.c.h.b16 %v994
      %v1088 = vunpack.c.l.b16 %v995
      %v1089 = vunpack.c.h.b16 %v995
      %v1090 = vunpack.c.l.b16 %v996
      %v1091 = vunpack.c.h.b16 %v996
      %v1092 = vunpack.c.l.b16 %v997
      %v1093 = vunpack.c.h.b16 %v997
      %v1094 = vpack.c.b16 %v1034, %v1030
      %v1095 = vpack.c.b16 %v1035, %v1031
      %v1096 = vpack.c.b16 %v1036, %v1032
      %v1097 = vpack.c.b16 %v1037, %v1033
      %v1098 = vpack.c.b16 %v1042, %v1038
      %v1099 = vpack.c.b16 %v1043, %v1039
      %v1100 = vpack.c.b16 %v1044, %v1040
      %v1101 = vpack.c.b16 %v1045, %v1041
      %v1102 = vpack.c.b16 %v1050, %v1046
      %v1103 = vpack.c.b16 %v1051, %v1047
      %v1104 = vpack.c.b16 %v1052, %v1048
      %v1105 = vpack.c.b16 %v1053, %v1049
      %v1106 = vpack.c.b16 %v1058, %v1054
      %v1107 = vpack.c.b16 %v1059, %v1055
      %v1108 = vpack.c.b16 %v1060, %v1056
      %v1109 = vpack.c.b16 %v1061, %v1057
      %v1110 = vpack.c.b16 %v1066, %v1062
      %v1111 = vpack.c.b16 %v1067, %v1063
      %v1112 = vpack.c.b16 %v1068, %v1064
      %v1113 = vpack.c.b16 %v1069, %v1065
      %v1114 = vpack.c.b16 %v1074, %v1070
      %v1115 = vpack.c.b16 %v1075, %v1071
      %v1116 = vpack.c.b16 %v1076, %v1072
      %v1117 = vpack.c.b16 %v1077, %v1073
      %v1118 = vpack.c.b16 %v1082, %v1078
      %v1119 = vpack.c.b16 %v1083, %v1079
      %v1120 = vpack.c.b16 %v1084, %v1080
      %v1121 = vpack.c.b16 %v1085, %v1081
      %v1122 = vpack.c.b16 %v1090, %v1086
      %v1123 = vpack.c.b16 %v1091, %v1087
      %v1124 = vpack.c.b16 %v1092, %v1088
      %v1125 = vpack.c.b16 %v1093, %v1089
      %1158 = vmatpush.bf16.msra.mxu0 %v1122
      %1159 = vmatpush.bf16.msra.mxu0 %v1118
      %1160 = vmatpush.bf16.msra.mxu0 %v1114
      %1161 = vmatpush.bf16.msra.mxu0 %v1110
      %1162 = vmatpush.bf16.msra.mxu0 %v1106
      %1163 = vmatpush.bf16.msra.mxu0 %v1102
      %1164 = vmatpush.bf16.msra.mxu0 %v1098
      %1165 = vmatpush.bf16.msra.mxu0 %v1094
      %1166 = vmatmul.bf16.gmra.mxu0 %v965
      %v1167 = vpop.f32.mrf.mxu0
      %v1168 = vadd.f32 0.0, %v1167
      %v1169 = vpop.f32.mrf.mxu0
      %1170 = vdwg.mxu0
      %1171 = vmatpush.bf16.msra.mxu0 %v1123
      %1172 = vmatpush.bf16.msra.mxu0 %v1119
      %1173 = vmatpush.bf16.msra.mxu0 %v1115
      %1174 = vmatpush.bf16.msra.mxu0 %v1111
      %1175 = vmatpush.bf16.msra.mxu0 %v1107
      %1176 = vmatpush.bf16.msra.mxu0 %v1103
      %1177 = vmatpush.bf16.msra.mxu0 %v1099
      %1178 = vmatpush.bf16.msra.mxu0 %v1095
      %1179 = vmatmul.bf16.gmra.mxu0 %v965
      %v1180 = vpop.f32.mrf.mxu0
      %v1181 = vadd.f32 0.0, %v1180
      %v1182 = vpop.f32.mrf.mxu0
      %1183 = vdwg.mxu0
      %1184 = vmatpush.bf16.msra.mxu0 %v1124
      %1185 = vmatpush.bf16.msra.mxu0 %v1120
      %1186 = vmatpush.bf16.msra.mxu0 %v1116
      %1187 = vmatpush.bf16.msra.mxu0 %v1112
      %1188 = vmatpush.bf16.msra.mxu0 %v1108
      %1189 = vmatpush.bf16.msra.mxu0 %v1104
      %1190 = vmatpush.bf16.msra.mxu0 %v1100
      %1191 = vmatpush.bf16.msra.mxu0 %v1096
      %1192 = vmatmul.bf16.gmra.mxu0 %v965
      %v1193 = vpop.f32.mrf.mxu0
      %v1194 = vadd.f32 0.0, %v1193
      %v1195 = vpop.f32.mrf.mxu0
      %1196 = vdwg.mxu0
      %1197 = vmatpush.bf16.msra.mxu0 %v1125
      %1198 = vmatpush.bf16.msra.mxu0 %v1121
      %1199 = vmatpush.bf16.msra.mxu0 %v1117
      %1200 = vmatpush.bf16.msra.mxu0 %v1113
      %1201 = vmatpush.bf16.msra.mxu0 %v1109
      %1202 = vmatpush.bf16.msra.mxu0 %v1105
      %1203 = vmatpush.bf16.msra.mxu0 %v1101
      %1204 = vmatpush.bf16.msra.mxu0 %v1097
      %1205 = vmatmul.bf16.gmra.mxu0 %v965
      %v1206 = vpop.f32.mrf.mxu0
      %v1207 = vadd.f32 0.0, %v1206
      %v1208 = vpop.f32.mrf.mxu0
      %1209 = vdwg.mxu0
      %v1210 = vadd.f32 %v961, %v1168
      %v1211 = vadd.f32 %v962, %v1181
      %v1212 = vadd.f32 %v963, %v1194
      %v1213 = vadd.f32 %v964, %v1207
      %v1214 = vxor.u32 %v1210, 2147483648
      %v1215 = vmul.f32 %v1214, 1.442695
      %v1216 = vpow.pop %v1215
      %v1217 = vadd.f32 %v1216, 1.0
      %v1218 = vrcp.pop %v1217
      %v1219 = vmul.f32 %v1217, %v1218
      %v1220 = vsub.f32 1.0, %v1219
      %v1221 = vmul.f32 %v1218, %v1220
      %v1222 = vadd.f32 %v1218, %v1221
      %vm1223 = vweird.f32 %v1217
      %vm1224 = vweird.f32 %v1218
      %vm1225 = vmor %vm1223, %vm1224
      %v1226 = vsel %vm1225, %v1218, %v1222
      %v1227 = vand.u32 2147483647, %v1217
      %vm1228 = vcmp.eq.f32.partialorder %v1227, 8.507059e+37
      %v1229 = vand.u32 %v1217, 2147483648
      %v1230 = vor.u32 1.1754944e-38, %v1229
      %v1231 = vsel %vm1228, %v1230, %v1226
      %v1232 = vmul.f32 1.0, %v1231
      %v1233 = vxor.u32 %v1211, 2147483648
      %v1234 = vmul.f32 %v1233, 1.442695
      %v1235 = vpow.pop %v1234
      %v1236 = vadd.f32 %v1235, 1.0
      %v1237 = vrcp.pop %v1236
      %v1238 = vmul.f32 %v1236, %v1237
      %v1239 = vsub.f32 1.0, %v1238
      %v1240 = vmul.f32 %v1237, %v1239
      %v1241 = vadd.f32 %v1237, %v1240
      %vm1242 = vweird.f32 %v1236
      %vm1243 = vweird.f32 %v1237
      %vm1244 = vmor %vm1242, %vm1243
      %v1245 = vsel %vm1244, %v1237, %v1241
      %v1246 = vand.u32 2147483647, %v1236
      %vm1247 = vcmp.eq.f32.partialorder %v1246, 8.507059e+37
      %v1248 = vand.u32 %v1236, 2147483648
      %v1249 = vor.u32 1.1754944e-38, %v1248
      %v1250 = vsel %vm1247, %v1249, %v1245
      %v1251 = vmul.f32 1.0, %v1250
      %v1252 = vtanh.pop %v1212
      %v1253 = vxor.u32 %v1213, 2147483648
      %v1254 = vmul.f32 %v1253, 1.442695
      %v1255 = vpow.pop %v1254
      %v1256 = vadd.f32 %v1255, 1.0
      %v1257 = vrcp.pop %v1256
      %v1258 = vmul.f32 %v1256, %v1257
      %v1259 = vsub.f32 1.0, %v1258
      %v1260 = vmul.f32 %v1257, %v1259
      %v1261 = vadd.f32 %v1257, %v1260
      %vm1262 = vweird.f32 %v1256
      %vm1263 = vweird.f32 %v1257
      %vm1264 = vmor %vm1262, %vm1263
      %v1265 = vsel %vm1264, %v1257, %v1261
      %v1266 = vand.u32 2147483647, %v1256
      %vm1267 = vcmp.eq.f32.partialorder %v1266, 8.507059e+37
      %v1268 = vand.u32 %v1256, 2147483648
      %v1269 = vor.u32 1.1754944e-38, %v1268
      %v1270 = vsel %vm1267, %v1269, %v1265
      %v1271 = vmul.f32 1.0, %v1270
      %v1272 = vmul.f32 %v1251, %v954
      %v1273 = vmul.f32 %v1232, %v1252
      %v1274 = vadd.f32 %v1272, %v1273
      %v1275 = vtanh.pop %v1274
      %v1276 = vmul.f32 %v1271, %v1275
    $region57: #{lstm_model_forward.1} parent=1 // loop_footer
      %s952 = sadd.s32 1, %s948
    $region58: #{lstm_model_forward.1} parent=1 // loop_footer_branch
      %947 = sbr.rel target = $region54
    $region59: #{lstm_model_forward.1} parent=1 // loop_exit
      _
    %s1277 = scalar_lea.vmem [#allocation5], 8
    %1278 = vst [vmem:[%s1277] sm:$0xff] %v953
    %s1279 = scalar_lea.vmem [#allocation7], 8
    %1280 = vst [vmem:[%s1279] sm:$0xff] %v954
    %v1281 = vpack.c.bf16 %v953, %v953
    %v1282 = vld [vmem:[%s9] sm:$0xf]
    %v1283 = vld [vmem:[%s9 + $0x4] sm:$0xf]
    %v1284 = vld [vmem:[%s9 + $0x8] sm:$0xf]
    %v1285 = vld [vmem:[%s9 + $0xc] sm:$0xf]
    %v1286 = vld [vmem:[%s9 + $0x10] sm:$0xf]
    %v1287 = vld [vmem:[%s9 + $0x14] sm:$0xf]
    %v1288 = vld [vmem:[%s9 + $0x18] sm:$0xf]
    %v1289 = vld [vmem:[%s9 + $0x1c] sm:$0xf]
    %v1290 = vld [vmem:[%s9 + $0x20] sm:$0xf]
    %v1291 = vld [vmem:[%s9 + $0x24] sm:$0xf]
    %v1292 = vld [vmem:[%s9 + $0x28] sm:$0xf]
    %v1293 = vld [vmem:[%s9 + $0x2c] sm:$0xf]
    %v1294 = vld [vmem:[%s9 + $0x30] sm:$0xf]
    %v1295 = vld [vmem:[%s9 + $0x34] sm:$0xf]
    %v1296 = vld [vmem:[%s9 + $0x38] sm:$0xf]
    %v1297 = vld [vmem:[%s9 + $0x3c] sm:$0xf]
    %v1298 = vld [vmem:[#allocation4] sm:$0x1]
    %v1300 = vperm.slane %v1298, 0
    %v1318 = vunpack.c.l.b16 %v1282
    %v1319 = vunpack.c.l.b16 %v1283
    %v1320 = vunpack.c.l.b16 %v1284
    %v1321 = vunpack.c.l.b16 %v1285
    %v1322 = vunpack.c.l.b16 %v1286
    %v1323 = vunpack.c.l.b16 %v1287
    %v1324 = vunpack.c.l.b16 %v1288
    %v1325 = vunpack.c.l.b16 %v1289
    %v1326 = vunpack.c.l.b16 %v1290
    %v1327 = vunpack.c.l.b16 %v1291
    %v1328 = vunpack.c.l.b16 %v1292
    %v1329 = vunpack.c.l.b16 %v1293
    %v1330 = vunpack.c.l.b16 %v1294
    %v1331 = vunpack.c.l.b16 %v1295
    %v1332 = vunpack.c.l.b16 %v1296
    %v1333 = vunpack.c.l.b16 %v1297
    %v1334 = vpack.c.b16 %v1319, %v1318
    %v1335 = vpack.c.b16 %v1321, %v1320
    %v1336 = vpack.c.b16 %v1323, %v1322
    %v1337 = vpack.c.b16 %v1325, %v1324
    %v1338 = vpack.c.b16 %v1327, %v1326
    %v1339 = vpack.c.b16 %v1329, %v1328
    %v1340 = vpack.c.b16 %v1331, %v1330
    %v1341 = vpack.c.b16 %v1333, %v1332
    %1350 = vmatpush.bf16.msra.mxu0 %v1341
    %1351 = vmatpush.bf16.msra.mxu0 %v1340
    %1352 = vmatpush.bf16.msra.mxu0 %v1339
    %1353 = vmatpush.bf16.msra.mxu0 %v1338
    %1354 = vmatpush.bf16.msra.mxu0 %v1337
    %1355 = vmatpush.bf16.msra.mxu0 %v1336
    %1356 = vmatpush.bf16.msra.mxu0 %v1335
    %1357 = vmatpush.bf16.msra.mxu0 %v1334
    %1358 = vmatmul.bf16.gmra.mxu0 %v1281
    %v1359 = vpop.f32.mrf.mxu0
    %v1360 = vadd.f32 %v1300, %v1359
    %v1361 = vpop.f32.mrf.mxu0
    %1362 = vdwg.mxu0
    %vm1363 = vcmask 7168
    %1364 = vst.msk [vmem:[%s11] sm:$0xff] %vm1363, %v1360
    // Predicated region
    $region60: #{lstm_model_forward.1} parent=1 // pred_check
      _
    $region61: #{lstm_model_forward.1} parent=1 // pred_check_branch
      %1366 = sbr.rel (0) target = $region63
    $region62: #{lstm_model_forward.1} parent=1 // pred_region
      _
    $region63: #{lstm_model_forward.1} parent=1 // pred_fallthru
      _
    // Predicated region
    $region64: #{lstm_model_forward.1} parent=1 // pred_check
      _
    $region65: #{lstm_model_forward.1} parent=1 // pred_check_branch
      %1368 = sbr.rel (0) target = $region67
    $region66: #{lstm_model_forward.1} parent=1 // pred_region
      %1370 = vsyncadd [#allocation6], 0
      %s1371 = sshll.u32 [#allocation5], 4
      %s1372 = int_to_ptr.vmem [resolvable:$true] %s1371
      %s1373 = sshll.u32 %s12, 4
      %s1374 = int_to_ptr.hbm [resolvable:$true] %s1373
      %1379 = dma.vmem_to_hbm [thread:$0]  %s1372, 256, %s1374, [#allocation6], 128, 128, 8
    $region67: #{lstm_model_forward.1} parent=1 // pred_fallthru
      _
    // Predicated region
    $region68: #{lstm_model_forward.1} parent=1 // pred_check
      _
    $region69: #{lstm_model_forward.1} parent=1 // pred_check_branch
      %1381 = sbr.rel (0) target = $region71
    $region70: #{lstm_model_forward.1} parent=1 // pred_region
      %1383 = vsyncadd [#allocation8], 0
      %s1384 = sshll.u32 [#allocation7], 4
      %s1385 = int_to_ptr.vmem [resolvable:$true] %s1384
      %s1386 = sshll.u32 %s13, 4
      %s1387 = int_to_ptr.hbm [resolvable:$true] %s1386
      %1392 = dma.vmem_to_hbm [thread:$0]  %s1385, 256, %s1387, [#allocation8], 128, 128, 8
    $region71: #{lstm_model_forward.1} parent=1 // pred_fallthru
      _
    // Predicated region
    $region72: #{lstm_model_forward.1} parent=1 // pred_check
      _
    $region73: #{lstm_model_forward.1} parent=1 // pred_check_branch
      %1394 = sbr.rel (0) target = $region75
    $region74: #{lstm_model_forward.1} parent=1 // pred_region
      _
    $region75: #{lstm_model_forward.1} parent=1 // pred_fallthru
      _
    // Predicated region
    $region76: #{lstm_model_forward.1} parent=1 // pred_check
      _
    $region77: #{lstm_model_forward.1} parent=1 // pred_check_branch
      %1396 = sbr.rel (0) target = $region79
    $region78: #{lstm_model_forward.1} parent=1 // pred_region
      %1398 = dma.done [#allocation6], 256
    $region79: #{lstm_model_forward.1} parent=1 // pred_fallthru
      _
    // Predicated region
    $region80: #{lstm_model_forward.1} parent=1 // pred_check
      _
    $region81: #{lstm_model_forward.1} parent=1 // pred_check_branch
      %1400 = sbr.rel (0) target = $region83
    $region82: #{lstm_model_forward.1} parent=1 // pred_region
      %1402 = dma.done [#allocation8], 256
    $region83: #{lstm_model_forward.1} parent=1 // pred_fallthru
      _
    %1403 = vsyncpa [#allocation6], 1
    %1404 = vsyncpa [#allocation8], 1

</llo_original>
